<compile_context>
chip_gen: v6e
topology: v6e:2x2x1
jax: 0.10.0
libtpu: 0.0.40
codegen_flags: <defaults>
</compile_context>

<pallas_src>
import jax
import jax.numpy as jnp
from jax.experimental import pallas as pl
from jax.experimental.pallas import tpu as pltpu


OUT_PAD = 128  # lane-dense combined head output width (>= action_dim + 1)


def _ppo_kernel(x_ref, w_enc_ref, b_enc_ref, w_h1_ref, b_h1_ref,
                w_h2_ref, b_h2_ref, head_ref, feat_ref, acc_ref):
    """One (batch-tile, K-tile) grid step.

    grid = (nb, nk): axis 0 tiles the batch ("parallel"), axis 1 tiles d_in for
    the encoder matmul ("arbitrary" reduction).  feat accumulates in f32 VMEM
    scratch; the fused policy/value heads run once, on the last K step.
    """
    k = pl.program_id(1)

    @pl.when(k == 0)
    def _init():
        acc_ref[...] = jnp.zeros_like(acc_ref)

    # ---- ViT stand-in: linear patch embedding, K-tiled (bf16 x MXU, f32 acc) ----
    acc_ref[...] += jnp.dot(x_ref[...], w_enc_ref[...],
                            preferred_element_type=jnp.float32)

    @pl.when(k == pl.num_programs(1) - 1)
    def _heads():
        feat = acc_ref[...] + b_enc_ref[...]            # f32
        feat_ref[...] = feat.astype(feat_ref.dtype)     # store immediately
        feat_bf = feat.astype(jnp.bfloat16)

        # fused first layer: (bt,512) @ (512, 2*hidden) -> ReLU  (policy[0] | value[0])
        h = jnp.dot(feat_bf, w_h1_ref[...],
                    preferred_element_type=jnp.float32) + b_h1_ref[...]
        h = jnp.maximum(h, 0.0).astype(jnp.bfloat16)

        # fused block-diagonal second layer: (bt, 2*hidden) @ (2*hidden, OUT_PAD)
        #   cols [0:A) = logits, col A = value, rest = zero padding (lane-dense store)
        out = jnp.dot(h, w_h2_ref[...],
                      preferred_element_type=jnp.float32) + b_h2_ref[...]
        head_ref[...] = out.astype(head_ref.dtype)


def _choose_tiles(B, d_in, max_bt=256):
    """Pick (bt, b_pad, tk).

    bt: largest divisor of B (<= max_bt, per-v7x cap) that leaves >= 2 grid
        steps (megacore sharding); small batches get one full-batch tile so no
        jnp.pad HBM round-trip is needed.
    tk: encoder K-tile over d_in, bounding per-step VMEM independently of d_in.
    """
    bt = None
    for cand in (256, 128, 64, 32, 16):
        if cand <= max_bt and B % cand == 0 and B // cand >= 2:
            bt = cand
            break
    if bt is None:
        bt = B if B <= max_bt else max_bt
    b_pad = bt * pl.cdiv(B, bt)          # == B except for awkward large batches

    if d_in > 1024:
        tk = next((c for c in (1024, 512, 256, 128) if d_in % c == 0), d_in)
    else:
        tk = d_in
    return bt, b_pad, tk


def ppo_agent_forward(obs, packed, action_dim, *, feat_dtype=jnp.bfloat16):
    """obs: (B, C, H, W) (NCHW). Returns (logits, value, feat)."""
    w_enc, b_enc, w_h1, b_h1, w_h2, b_h2 = packed

    B = obs.shape[0]
    x = obs.reshape(B, -1)
    # Dominant HBM stream is x; feed it bf16.  (Store rollout observation
    # buffers as bf16 so this cast is a no-op in the real pipeline.)
    if x.dtype != jnp.bfloat16:
        x = x.astype(jnp.bfloat16)
    d_in = x.shape[1]
    feat_dim = w_enc.shape[1]          # 512
    two_hidden = w_h1.shape[1]         # 2 * hidden_dim
    out_pad = w_h2.shape[1]            # OUT_PAD (128)

    bt, b_pad, tk = _choose_tiles(B, d_in)
    if b_pad != B:                     # rare path (awkward large B only)
        x = jnp.pad(x, ((0, b_pad - B), (0, 0)))
    nb, nk = b_pad // bt, d_in // tk
    grid = (nb, nk)

    const = pl.Buffered(1)             # constant-index blocks: no double buffering
    w_enc_mode = pl.Buffered(1) if nk == 1 else pl.Buffered(2)

    in_specs = [
        pl.BlockSpec((bt, tk), lambda i, kk: (i, kk)),                    # x tile
        pl.BlockSpec((tk, feat_dim), lambda i, kk: (kk, 0),
                     pipeline_mode=w_enc_mode),                           # w_enc
        pl.BlockSpec((1, feat_dim), lambda i, kk: (0, 0), pipeline_mode=const),
        pl.BlockSpec((feat_dim, two_hidden), lambda i, kk: (0, 0), pipeline_mode=const),
        pl.BlockSpec((1, two_hidden), lambda i, kk: (0, 0), pipeline_mode=const),
        pl.BlockSpec((two_hidden, out_pad), lambda i, kk: (0, 0), pipeline_mode=const),
        pl.BlockSpec((1, out_pad), lambda i, kk: (0, 0), pipeline_mode=const),
    ]
    out_specs = (
        pl.BlockSpec((bt, out_pad), lambda i, kk: (i, 0)),    # lane-dense head slab
        pl.BlockSpec((bt, feat_dim), lambda i, kk: (i, 0)),   # feat
    )
    out_shapes = (
        jax.ShapeDtypeStruct((b_pad, out_pad), jnp.float32),
        jax.ShapeDtypeStruct((b_pad, feat_dim), feat_dtype),
    )
    scratch_shapes = [pltpu.VMEM((bt, feat_dim), jnp.float32)]   # feat accumulator

    # explicit VMEM budget (defaults are only 16 MiB v5e / 32 MiB v6e+; keep <= 56 MiB for v7x)
    feat_bytes = jnp.dtype(feat_dtype).itemsize
    est = (2 * bt * tk * 2                                            # x tile (bf16, 2 bufs)
           + (1 if nk == 1 else 2) * tk * feat_dim * 2                # w_enc tile(s)
           + feat_dim * two_hidden * 2 + two_hidden * out_pad * 2     # head weights (1 buf)
           + (feat_dim + two_hidden + out_pad) * 4                    # biases (1 buf)
           + 2 * bt * out_pad * 4                                     # head out (2 bufs)
           + 2 * bt * feat_dim * feat_bytes                           # feat out (2 bufs)
           + bt * feat_dim * 4)                                       # accumulator scratch
    vmem_limit = int(min(max(2 * est + (4 << 20), 32 << 20), 56 << 20))

    flops = 2 * b_pad * (d_in * feat_dim + feat_dim * two_hidden
                         + two_hidden * out_pad)
    w_enc_reads = 1 if nk == 1 else nb    # K-tiled w_enc is re-streamed per batch tile
    bytes_accessed = (
        b_pad * d_in * 2
        + w_enc_reads * int(w_enc.size) * w_enc.dtype.itemsize
        + sum(int(a.size) * a.dtype.itemsize for a in (b_enc, w_h1, b_h1, w_h2, b_h2))
        + b_pad * (out_pad * 4 + feat_dim * feat_bytes)
    )
    cost = pl.CostEstimate(flops=flops, transcendentals=0,
                           bytes_accessed=bytes_accessed)

    head, feat = pl.pallas_call(
        _ppo_kernel,
        out_shape=out_shapes,
        grid=grid,
        in_specs=in_specs,
        out_specs=out_specs,
        scratch_shapes=scratch_shapes,
        compiler_params=pltpu.CompilerParams(
            dimension_semantics=("parallel", "arbitrary"),
            vmem_limit_bytes=vmem_limit),
        cost_estimate=cost,
    )(x, w_enc, b_enc, w_h1, b_h1, w_h2, b_h2)

    logits = head[:B, :action_dim]
    value = head[:B, action_dim]          # PyTorch: value.squeeze(-1)
    return logits, value, feat[:B]


def init_params(key, d_in, feat_dim=512, hidden_dim=256, action_dim=4):
    """Deterministic PyTorch-Linear-style init: U(-1/sqrt(fan_in), 1/sqrt(fan_in))."""
    def linear(k, fan_in, fan_out):
        kw, kb = jax.random.split(k)
        bound = 1.0 / jnp.sqrt(fan_in)
        w = jax.random.uniform(kw, (fan_in, fan_out), jnp.float32, -bound, bound)
        b = jax.random.uniform(kb, (1, fan_out), jnp.float32, -bound, bound)
        return w, b

    k_enc, k_p1, k_p2, k_v1, k_v2 = jax.random.split(key, 5)
    w_enc, b_enc = linear(k_enc, d_in, feat_dim)       # ViT stand-in
    wp1, bp1 = linear(k_p1, feat_dim, hidden_dim)      # policy[0]
    wp2, bp2 = linear(k_p2, hidden_dim, action_dim)    # policy[2]
    wv1, bv1 = linear(k_v1, feat_dim, hidden_dim)      # value[0]
    wv2, bv2 = linear(k_v2, hidden_dim, 1)             # value[2]
    return (w_enc, b_enc, wp1, bp1, wp2, bp2, wv1, bv1, wv2, bv2)


def pack_params(params, out_pad=OUT_PAD):
    """Fuse policy/value heads, pad head output to 128 lanes, cast weights to bf16."""
    (w_enc, b_enc, wp1, bp1, wp2, bp2, wv1, bv1, wv2, bv2) = params
    hidden = wp1.shape[1]
    action_dim = wp2.shape[1]
    assert action_dim + 1 <= out_pad

    # fused first layer: (512, 2*hidden) = [policy[0] | value[0]]
    w_h1 = jnp.concatenate([wp1, wv1], axis=1)
    b_h1 = jnp.concatenate([bp1, bv1], axis=1)

    # fused block-diagonal second layer: (2*hidden, out_pad)
    w_h2 = jnp.zeros((2 * hidden, out_pad), jnp.float32)
    w_h2 = w_h2.at[:hidden, :action_dim].set(wp2)
    w_h2 = w_h2.at[hidden:, action_dim:action_dim + 1].set(wv2)
    b_h2 = jnp.zeros((1, out_pad), jnp.float32)
    b_h2 = b_h2.at[:, :action_dim].set(bp2)
    b_h2 = b_h2.at[:, action_dim:action_dim + 1].set(bv2)

    # bf16 weights (halve HBM traffic, MXU-native); biases stay f32 (VPU adds)
    return (w_enc.astype(jnp.bfloat16), b_enc,
            w_h1.astype(jnp.bfloat16), b_h1,
            w_h2.astype(jnp.bfloat16), b_h2)


if __name__ == "__main__":
    key = jax.random.PRNGKey(0)
    k_obs, k_par = jax.random.split(key)

    # small shapes: batch=8, channels=4, spatial=16x16 -> flattened 1024-dim obs
    B, C, H, W = 8, 4, 16, 16
    hidden_dim = 256
    action_dim = 4

    obs = jax.random.normal(k_obs, (B, C, H, W), jnp.float32)
    params = init_params(k_par, d_in=C * H * W, feat_dim=512,
                         hidden_dim=hidden_dim, action_dim=action_dim)
    packed = pack_params(params)

    logits, value, feat = ppo_agent_forward(obs, packed, action_dim)
    jax.block_until_ready((logits, value, feat))

    assert logits.shape == (B, action_dim)
    assert value.shape == (B,)
    assert feat.shape == (B, 512)

    # reference check in plain JAX using the same bf16-x / bf16-weight / f32-accum path
    x = obs.reshape(B, -1).astype(jnp.bfloat16)
    w_enc, b_enc, w_h1, b_h1, w_h2, b_h2 = packed
    feat_ref = jnp.dot(x, w_enc, preferred_element_type=jnp.float32) + b_enc
    h_ref = jnp.maximum(jnp.dot(feat_ref.astype(jnp.bfloat16), w_h1,
                                preferred_element_type=jnp.float32) + b_h1, 0.0)
    head_ref = jnp.dot(h_ref.astype(jnp.bfloat16), w_h2,
                       preferred_element_type=jnp.float32) + b_h2
    logits_ref = head_ref[:, :action_dim]
    value_ref = head_ref[:, action_dim]

    assert jnp.allclose(feat.astype(jnp.float32), feat_ref, atol=3e-2, rtol=3e-2)
    assert jnp.allclose(logits, logits_ref, atol=2e-2, rtol=2e-2)
    assert jnp.allclose(value, value_ref, atol=2e-2, rtol=2e-2)

    print("KERNEL_OK")
</pallas_src>

<mosaic_0001>
module attributes {stable_mosaic.version = 11 : i64} {
  func.func @_ppo_kernel(%arg0: i32, %arg1: i32, %arg2: memref<8x1024xbf16, #tpu.memory_space<vmem>>, %arg3: memref<1024x512xbf16, #tpu.memory_space<vmem>>, %arg4: memref<1x512xf32, #tpu.memory_space<vmem>>, %arg5: memref<512x512xbf16, #tpu.memory_space<vmem>>, %arg6: memref<1x512xf32, #tpu.memory_space<vmem>>, %arg7: memref<512x128xbf16, #tpu.memory_space<vmem>>, %arg8: memref<1x128xf32, #tpu.memory_space<vmem>>, %arg9: memref<8x128xf32, #tpu.memory_space<vmem>>, %arg10: memref<8x512xbf16, #tpu.memory_space<vmem>>, %arg11: memref<8x512xf32, #tpu.memory_space<vmem>>) attributes {dimension_semantics = [#tpu.dimension_semantics<parallel>, #tpu.dimension_semantics<arbitrary>], iteration_bounds = array<i64: 1, 1>, scalar_prefetch = 0 : i64, scratch_operands = 1 : i64, tpu.core_type = #tpu.core_type<tc>, window_params = [{transform_indices = @transform_0, window_bounds = array<i64: 8, 1024>}, {pipeline_mode = #tpu.pipeline_mode<synchronous>, transform_indices = @transform_1, window_bounds = array<i64: 1024, 512>}, {pipeline_mode = #tpu.pipeline_mode<synchronous>, transform_indices = @transform_2, window_bounds = array<i64: 1, 512>}, {pipeline_mode = #tpu.pipeline_mode<synchronous>, transform_indices = @transform_3, window_bounds = array<i64: 512, 512>}, {pipeline_mode = #tpu.pipeline_mode<synchronous>, transform_indices = @transform_4, window_bounds = array<i64: 1, 512>}, {pipeline_mode = #tpu.pipeline_mode<synchronous>, transform_indices = @transform_5, window_bounds = array<i64: 512, 128>}, {pipeline_mode = #tpu.pipeline_mode<synchronous>, transform_indices = @transform_6, window_bounds = array<i64: 1, 128>}, {transform_indices = @transform_7, window_bounds = array<i64: 8, 128>}, {transform_indices = @transform_8, window_bounds = array<i64: 8, 512>}]} {
    %c0_i32 = arith.constant 0 : i32
    %0 = arith.cmpi eq, %arg1, %c0_i32 : i32
    %1 = arith.extui %0 : i1 to i32
    %c0_i32_0 = arith.constant 0 : i32
    %2 = arith.cmpi ne, %1, %c0_i32_0 : i32
    scf.if %2 {
      %cst_10 = arith.constant 0.000000e+00 : f32
      %12 = vector.broadcast %cst_10 : f32 to vector<8x512xf32>
      %c0_11 = arith.constant 0 : index
      %c0_12 = arith.constant 0 : index
      %13 = vector.load %arg11[%c0_11, %c0_12] : memref<8x512xf32, #tpu.memory_space<vmem>>, vector<8x512xf32>
      tpu.vector_store %arg11[%c0_11, %c0_12], %12 {strides = array<i32>} : memref<8x512xf32, #tpu.memory_space<vmem>>, vector<8x512xf32>,
    } else {
    }
    %c0 = arith.constant 0 : index
    %c0_1 = arith.constant 0 : index
    %3 = vector.load %arg11[%c0, %c0_1] : memref<8x512xf32, #tpu.memory_space<vmem>>, vector<8x512xf32>
    %c0_2 = arith.constant 0 : index
    %c0_3 = arith.constant 0 : index
    %4 = vector.load %arg2[%c0_2, %c0_3] : memref<8x1024xbf16, #tpu.memory_space<vmem>>, vector<8x1024xbf16>
    %c0_4 = arith.constant 0 : index
    %c0_5 = arith.constant 0 : index
    %5 = vector.load %arg3[%c0_4, %c0_5] : memref<1024x512xbf16, #tpu.memory_space<vmem>>, vector<1024x512xbf16>
    %cst = arith.constant dense<0.000000e+00> : vector<8x512xf32>
    %6 = tpu.matmul %4, %5, %cst {dimension_numbers = #tpu.dot_dimension_numbers<[1], [0], [0], [1], [0, 0, 1, 1], [], []>} : vector<8x1024xbf16>, vector<1024x512xbf16>, vector<8x512xf32> -> vector<8x512xf32>
    %7 = arith.addf %3, %6 : vector<8x512xf32>
    %c0_6 = arith.constant 0 : index
    %c0_7 = arith.constant 0 : index
    %8 = vector.load %arg11[%c0_6, %c0_7] : memref<8x512xf32, #tpu.memory_space<vmem>>, vector<8x512xf32>
    tpu.vector_store %arg11[%c0_6, %c0_7], %7 {strides = array<i32>} : memref<8x512xf32, #tpu.memory_space<vmem>>, vector<8x512xf32>,
    %c0_i32_8 = arith.constant 0 : i32
    %9 = arith.cmpi eq, %arg1, %c0_i32_8 : i32
    %10 = arith.extui %9 : i1 to i32
    %c0_i32_9 = arith.constant 0 : i32
    %11 = arith.cmpi ne, %10, %c0_i32_9 : i32
    scf.if %11 {
      %c0_10 = arith.constant 0 : index
      %c0_11 = arith.constant 0 : index
      %12 = vector.load %arg11[%c0_10, %c0_11] : memref<8x512xf32, #tpu.memory_space<vmem>>, vector<8x512xf32>
      %c0_12 = arith.constant 0 : index
      %c0_13 = arith.constant 0 : index
      %13 = vector.load %arg4[%c0_12, %c0_13] : memref<1x512xf32, #tpu.memory_space<vmem>>, vector<1x512xf32>
      %14 = vector.broadcast %13 : vector<1x512xf32> to vector<8x512xf32>
      %15 = arith.addf %12, %14 : vector<8x512xf32>
      %16 = arith.truncf %15 : vector<8x512xf32> to vector<8x512xbf16>
      %c0_14 = arith.constant 0 : index
      %c0_15 = arith.constant 0 : index
      %17 = vector.load %arg10[%c0_14, %c0_15] : memref<8x512xbf16, #tpu.memory_space<vmem>>, vector<8x512xbf16>
      tpu.vector_store %arg10[%c0_14, %c0_15], %16 {strides = array<i32>} : memref<8x512xbf16, #tpu.memory_space<vmem>>, vector<8x512xbf16>,
      %18 = arith.truncf %15 : vector<8x512xf32> to vector<8x512xbf16>
      %c0_16 = arith.constant 0 : index
      %c0_17 = arith.constant 0 : index
      %19 = vector.load %arg5[%c0_16, %c0_17] : memref<512x512xbf16, #tpu.memory_space<vmem>>, vector<512x512xbf16>
      %cst_18 = arith.constant dense<0.000000e+00> : vector<8x512xf32>
      %20 = tpu.matmul %18, %19, %cst_18 {dimension_numbers = #tpu.dot_dimension_numbers<[1], [0], [0], [1], [0, 0, 1, 1], [], []>} : vector<8x512xbf16>, vector<512x512xbf16>, vector<8x512xf32> -> vector<8x512xf32>
      %c0_19 = arith.constant 0 : index
      %c0_20 = arith.constant 0 : index
      %21 = vector.load %arg6[%c0_19, %c0_20] : memref<1x512xf32, #tpu.memory_space<vmem>>, vector<1x512xf32>
      %22 = vector.broadcast %21 : vector<1x512xf32> to vector<8x512xf32>
      %23 = arith.addf %20, %22 : vector<8x512xf32>
      %cst_21 = arith.constant 0.000000e+00 : f32
      %24 = vector.broadcast %cst_21 : f32 to vector<8x512xf32>
      %25 = arith.maximumf %23, %24 : vector<8x512xf32>
      %26 = arith.truncf %25 : vector<8x512xf32> to vector<8x512xbf16>
      %c0_22 = arith.constant 0 : index
      %c0_23 = arith.constant 0 : index
      %27 = vector.load %arg7[%c0_22, %c0_23] : memref<512x128xbf16, #tpu.memory_space<vmem>>, vector<512x128xbf16>
      %cst_24 = arith.constant dense<0.000000e+00> : vector<8x128xf32>
      %28 = tpu.matmul %26, %27, %cst_24 {dimension_numbers = #tpu.dot_dimension_numbers<[1], [0], [0], [1], [0, 0, 1, 1], [], []>} : vector<8x512xbf16>, vector<512x128xbf16>, vector<8x128xf32> -> vector<8x128xf32>
      %c0_25 = arith.constant 0 : index
      %c0_26 = arith.constant 0 : index
      %29 = vector.load %arg8[%c0_25, %c0_26] : memref<1x128xf32, #tpu.memory_space<vmem>>, vector<1x128xf32>
      %30 = vector.broadcast %29 : vector<1x128xf32> to vector<8x128xf32>
      %31 = arith.addf %28, %30 : vector<8x128xf32>
      %c0_27 = arith.constant 0 : index
      %c0_28 = arith.constant 0 : index
      %32 = vector.load %arg9[%c0_27, %c0_28] : memref<8x128xf32, #tpu.memory_space<vmem>>, vector<8x128xf32>
      tpu.vector_store %arg9[%c0_27, %c0_28], %31 {strides = array<i32>} : memref<8x128xf32, #tpu.memory_space<vmem>>, vector<8x128xf32>,
    } else {
    }
    return
  }
  func.func @transform_0(%arg0: i32, %arg1: i32) -> (i32, i32) {
    %c0_i32 = arith.constant 0 : i32
    return %arg0, %arg1 : i32, i32
  }
  func.func @transform_1(%arg0: i32, %arg1: i32) -> (i32, i32) {
    %c0_i32 = arith.constant 0 : i32
    %c0_i32_0 = arith.constant 0 : i32
    return %arg1, %c0_i32 : i32, i32
  }
  func.func @transform_2(%arg0: i32, %arg1: i32) -> (i32, i32) {
    %c0_i32 = arith.constant 0 : i32
    %c0_i32_0 = arith.constant 0 : i32
    %c0_i32_1 = arith.constant 0 : i32
    return %c0_i32, %c0_i32_0 : i32, i32
  }
  func.func @transform_3(%arg0: i32, %arg1: i32) -> (i32, i32) {
    %c0_i32 = arith.constant 0 : i32
    %c0_i32_0 = arith.constant 0 : i32
    %c0_i32_1 = arith.constant 0 : i32
    return %c0_i32, %c0_i32_0 : i32, i32
  }
  func.func @transform_4(%arg0: i32, %arg1: i32) -> (i32, i32) {
    %c0_i32 = arith.constant 0 : i32
    %c0_i32_0 = arith.constant 0 : i32
    %c0_i32_1 = arith.constant 0 : i32
    return %c0_i32, %c0_i32_0 : i32, i32
  }
  func.func @transform_5(%arg0: i32, %arg1: i32) -> (i32, i32) {
    %c0_i32 = arith.constant 0 : i32
    %c0_i32_0 = arith.constant 0 : i32
    %c0_i32_1 = arith.constant 0 : i32
    return %c0_i32, %c0_i32_0 : i32, i32
  }
  func.func @transform_6(%arg0: i32, %arg1: i32) -> (i32, i32) {
    %c0_i32 = arith.constant 0 : i32
    %c0_i32_0 = arith.constant 0 : i32
    %c0_i32_1 = arith.constant 0 : i32
    return %c0_i32, %c0_i32_0 : i32, i32
  }
  func.func @transform_7(%arg0: i32, %arg1: i32) -> (i32, i32) {
    %c0_i32 = arith.constant 0 : i32
    %c0_i32_0 = arith.constant 0 : i32
    return %arg0, %c0_i32 : i32, i32
  }
  func.func @transform_8(%arg0: i32, %arg1: i32) -> (i32, i32) {
    %c0_i32 = arith.constant 0 : i32
    %c0_i32_0 = arith.constant 0 : i32
    return %arg0, %c0_i32 : i32, i32
  }
}

</mosaic_0001>

<llo_original>
// kernel: tpu_custom_call.1
$region0: #{tpu_custom_call.1}
  #allocation0 [shape = 'u32[]', space=smem, size = 0x4, offset = 0x4, fixed_abs, tag = 'smem constant byte address 0x4 - core index']
  #allocation1 [shape = 'u32[144,128]{1,0:T(1,128)}', space=vmem, size = 0x12000, scoped, tag = 'internal scratch']
  #allocation2 [shape = 'f32[8,512]{1,0:T(8,128)}', space=vmem, size = 0x4000, scoped, tag = 'scratch operand']
  %s0 = inlined_call_operand.hbm [shape: bf16[8,1024], index: 0, kind: input, shape index: {}]
  %s1 = inlined_call_operand.hbm [shape: bf16[1024,512], index: 1, kind: input, shape index: {}]
  %s2 = inlined_call_operand.hbm [shape: f32[1,512], index: 2, kind: input, shape index: {}]
  %s3 = inlined_call_operand.hbm [shape: bf16[512,512], index: 3, kind: input, shape index: {}]
  %s4 = inlined_call_operand.vmem [shape: f32[1,512], index: 4, kind: input, shape index: {}]
  %s5 = inlined_call_operand.hbm [shape: bf16[512,128], index: 5, kind: input, shape index: {}]
  %s6 = inlined_call_operand.vmem [shape: f32[1,128], index: 6, kind: input, shape index: {}]
  %s7 = inlined_call_operand.hbm [shape: f32[8,128], index: 7, kind: output, shape index: {0}]
  %s8 = inlined_call_operand.hbm [shape: bf16[8,512], index: 8, kind: output, shape index: {1}]
  %9 = xla_tuple %s7, %s8
  %s10 = sld [smem:[#allocation0]]
  $region74: #{tpu_custom_call.1} parent=0
    _
  %s12 = ssub.s32 1, %s10
  %s13 = scalar_select 0, %s12, %s10
  $region1: #{tpu_custom_call.1} parent=0
    #allocation3 [shape = 'u8[16384]{0}', space=vmem, size = 0x4000, scoped, tag = 'input window, operand 0, single buffered']
    #allocation4 [shape = 's32[1]{0}', space=sflag, size = 0x4, scoped, tag = 'scoped memory for tpu_custom_call.1']
    #allocation5 [shape = 's32[1]{0}', space=sflag, size = 0x4, scoped, tag = 'scoped memory for tpu_custom_call.1']
    #allocation6 [shape = 'u8[1048576]{0}', space=vmem, size = 0x100000, scoped, tag = 'input window, operand 1, single buffered']
    #allocation7 [shape = 's32[1]{0}', space=sflag, size = 0x4, scoped, tag = 'scoped memory for tpu_custom_call.1']
    #allocation8 [shape = 'u8[2048]{0}', space=vmem, size = 0x800, scoped, tag = 'input window, operand 2, single buffered']
    #allocation9 [shape = 'u8[524288]{0}', space=vmem, size = 0x80000, scoped, tag = 'input window, operand 3, single buffered']
    #allocation10 [shape = 's32[1]{0}', space=sflag, size = 0x4, scoped, tag = 'scoped memory for tpu_custom_call.1']
    #allocation11 [shape = 'u8[131072]{0}', space=vmem, size = 0x20000, scoped, tag = 'input window, operand 5, single buffered']
    #allocation12 [shape = 'u8[4096]{0}', space=vmem, size = 0x1000, scoped, tag = 'output window, operand 0, single buffered']
    #allocation13 [shape = 'u8[8192]{0}', space=vmem, size = 0x2000, scoped, tag = 'output window, operand 1, single buffered']
    #allocation14 [shape = 's32[1]{0}', space=sflag, size = 0x4, scoped, tag = 'scoped memory for tpu_custom_call.1']
    %14 = vsyncpa [#allocation4], 0
    %15 = vsyncpa [#allocation7], 0
    %16 = vsyncpa [#allocation10], 0
    %17 = vsyncpa [#allocation5], 0
    %18 = vsyncpa [#allocation14], 0
    // Predicated region
    $region2: #{tpu_custom_call.1} parent=1 // pred_check
      _
    $region3: #{tpu_custom_call.1} parent=1 // pred_check_branch
      %20 = sbr.rel (0) target = $region5
    $region4: #{tpu_custom_call.1} parent=1 // pred_region
      %s22 = ssub.s32 512, 512
      %23 = vsyncadd [#allocation4], %s22
      %s25 = sshll.u32 [#allocation3], 4
      %s26 = int_to_ptr.vmem [resolvable:$true] %s25
      %28 = dma.hbm_to_vmem [thread:$0]  %s0, 512, %s26, [#allocation4]
    $region5: #{tpu_custom_call.1} parent=1 // pred_fallthru
      _
    // Predicated region
    $region6: #{tpu_custom_call.1} parent=1 // pred_check
      _
    $region7: #{tpu_custom_call.1} parent=1 // pred_check_branch
      %30 = sbr.rel (0) target = $region9
    $region8: #{tpu_custom_call.1} parent=1 // pred_region
      %s32 = ssub.s32 32768, 32768
      %33 = vsyncadd [#allocation7], %s32
      %s34 = sshll.u32 [#allocation6], 4
      %s35 = int_to_ptr.vmem [resolvable:$true] %s34
      %40 = dma.hbm_to_vmem [thread:$0]  %s1, 32768, %s35, [#allocation7], 256, 256, 16
    $region9: #{tpu_custom_call.1} parent=1 // pred_fallthru
      _
    // Predicated region
    $region10: #{tpu_custom_call.1} parent=1 // pred_check
      _
    $region11: #{tpu_custom_call.1} parent=1 // pred_check_branch
      %42 = sbr.rel (0) target = $region13
    $region12: #{tpu_custom_call.1} parent=1 // pred_region
      %s44 = ssub.s32 64, 64
      %45 = vsyncadd [#allocation7], %s44
      %s47 = sshll.u32 [#allocation8], 4
      %s48 = int_to_ptr.vmem [resolvable:$true] %s47
      %50 = dma.hbm_to_vmem [thread:$0]  %s2, 64, %s48, [#allocation7]
    $region13: #{tpu_custom_call.1} parent=1 // pred_fallthru
      _
    // Predicated region
    $region14: #{tpu_custom_call.1} parent=1 // pred_check
      _
    $region15: #{tpu_custom_call.1} parent=1 // pred_check_branch
      %52 = sbr.rel (0) target = $region17
    $region16: #{tpu_custom_call.1} parent=1 // pred_region
      %s54 = ssub.s32 16384, 16384
      %55 = vsyncadd [#allocation10], %s54
      %s56 = sshll.u32 [#allocation9], 4
      %s57 = int_to_ptr.vmem [resolvable:$true] %s56
      %62 = dma.hbm_to_vmem [thread:$0]  %s3, 16384, %s57, [#allocation10], 256, 256, 16
    $region17: #{tpu_custom_call.1} parent=1 // pred_fallthru
      _
    // Predicated region
    $region18: #{tpu_custom_call.1} parent=1 // pred_check
      _
    $region19: #{tpu_custom_call.1} parent=1 // pred_check_branch
      %64 = sbr.rel (0) target = $region21
    $region20: #{tpu_custom_call.1} parent=1 // pred_region
      _
    $region21: #{tpu_custom_call.1} parent=1 // pred_fallthru
      _
    // Predicated region
    $region22: #{tpu_custom_call.1} parent=1 // pred_check
      _
    $region23: #{tpu_custom_call.1} parent=1 // pred_check_branch
      %66 = sbr.rel (0) target = $region25
    $region24: #{tpu_custom_call.1} parent=1 // pred_region
      %s68 = ssub.s32 4096, 4096
      %69 = vsyncadd [#allocation10], %s68
      %s70 = sshll.u32 [#allocation11], 4
      %s71 = int_to_ptr.vmem [resolvable:$true] %s70
      %76 = dma.hbm_to_vmem [thread:$0]  %s5, 4096, %s71, [#allocation10], 64, 64, 4
    $region25: #{tpu_custom_call.1} parent=1 // pred_fallthru
      _
    // Predicated region
    $region26: #{tpu_custom_call.1} parent=1 // pred_check
      _
    $region27: #{tpu_custom_call.1} parent=1 // pred_check_branch
      %78 = sbr.rel (0) target = $region29
    $region28: #{tpu_custom_call.1} parent=1 // pred_region
      _
    $region29: #{tpu_custom_call.1} parent=1 // pred_fallthru
      _
    // Predicated region
    $region30: #{tpu_custom_call.1} parent=1 // pred_check
      _
    $region31: #{tpu_custom_call.1} parent=1 // pred_check_branch
      %80 = sbr.rel (0) target = $region33
    $region32: #{tpu_custom_call.1} parent=1 // pred_region
      %81 = dma.done [#allocation4], 512
    $region33: #{tpu_custom_call.1} parent=1 // pred_fallthru
      _
    // Predicated region
    $region34: #{tpu_custom_call.1} parent=1 // pred_check
      _
    $region35: #{tpu_custom_call.1} parent=1 // pred_check_branch
      %83 = sbr.rel (0) target = $region37
    $region36: #{tpu_custom_call.1} parent=1 // pred_region
      %84 = dma.done [#allocation7], 32768
    $region37: #{tpu_custom_call.1} parent=1 // pred_fallthru
      _
    // Predicated region
    $region38: #{tpu_custom_call.1} parent=1 // pred_check
      _
    $region39: #{tpu_custom_call.1} parent=1 // pred_check_branch
      %86 = sbr.rel (0) target = $region41
    $region40: #{tpu_custom_call.1} parent=1 // pred_region
      %87 = dma.done [#allocation7], 64
    $region41: #{tpu_custom_call.1} parent=1 // pred_fallthru
      _
    // Predicated region
    $region42: #{tpu_custom_call.1} parent=1 // pred_check
      _
    $region43: #{tpu_custom_call.1} parent=1 // pred_check_branch
      %89 = sbr.rel (0) target = $region45
    $region44: #{tpu_custom_call.1} parent=1 // pred_region
      %90 = dma.done [#allocation10], 16384
    $region45: #{tpu_custom_call.1} parent=1 // pred_fallthru
      _
    // Predicated region
    $region46: #{tpu_custom_call.1} parent=1 // pred_check
      _
    $region47: #{tpu_custom_call.1} parent=1 // pred_check_branch
      %92 = sbr.rel (0) target = $region49
    $region48: #{tpu_custom_call.1} parent=1 // pred_region
      %93 = dma.done [#allocation10], 4096
    $region49: #{tpu_custom_call.1} parent=1 // pred_fallthru
      _
    %p95 = scmp.eq.s32.totalorder 0, 0
    // Predicated region
    $region50: #{tpu_custom_call.1} parent=1 // pred_check
      %p96 = pneg %p95
    $region51: #{tpu_custom_call.1} parent=1 // pred_check_branch
      %98 = sbr.rel (%p96) target = $region53
    $region52: #{tpu_custom_call.1} parent=1 // pred_region
      %99 = vst [vmem:[#allocation2] sm:$0xff] 0.0
      %100 = vst [vmem:[#allocation2 + $0x8] sm:$0xff] 0.0
      %101 = vst [vmem:[#allocation2 + $0x10] sm:$0xff] 0.0
      %102 = vst [vmem:[#allocation2 + $0x18] sm:$0xff] 0.0
    $region53: #{tpu_custom_call.1} parent=1 // pred_fallthru
      _
    %v103 = vld [vmem:[#allocation2] sm:$0xff]
    %v104 = vld [vmem:[#allocation2 + $0x8] sm:$0xff]
    %v105 = vld [vmem:[#allocation2 + $0x10] sm:$0xff]
    %v106 = vld [vmem:[#allocation2 + $0x18] sm:$0xff]
    %v107 = vld [vmem:[#allocation3] sm:$0xff]
    %v108 = vld [vmem:[#allocation3 + $0x8] sm:$0xff]
    %v109 = vld [vmem:[#allocation3 + $0x10] sm:$0xff]
    %v110 = vld [vmem:[#allocation3 + $0x18] sm:$0xff]
    %v111 = vld [vmem:[#allocation6] sm:$0xff]
    %v112 = vld [vmem:[#allocation6 + $0x8] sm:$0xff]
    %v113 = vld [vmem:[#allocation6 + $0x10] sm:$0xff]
    %v114 = vld [vmem:[#allocation6 + $0x18] sm:$0xff]
    %v115 = vld [vmem:[#allocation6 + $0x20] sm:$0xff]
    %v116 = vld [vmem:[#allocation6 + $0x28] sm:$0xff]
    %v117 = vld [vmem:[#allocation6 + $0x30] sm:$0xff]
    %v118 = vld [vmem:[#allocation6 + $0x38] sm:$0xff]
    %v119 = vld [vmem:[#allocation6 + $0x40] sm:$0xff]
    %v120 = vld [vmem:[#allocation6 + $0x48] sm:$0xff]
    %v121 = vld [vmem:[#allocation6 + $0x50] sm:$0xff]
    %v122 = vld [vmem:[#allocation6 + $0x58] sm:$0xff]
    %v123 = vld [vmem:[#allocation6 + $0x60] sm:$0xff]
    %v124 = vld [vmem:[#allocation6 + $0x68] sm:$0xff]
    %v125 = vld [vmem:[#allocation6 + $0x70] sm:$0xff]
    %v126 = vld [vmem:[#allocation6 + $0x78] sm:$0xff]
    %v127 = vld [vmem:[#allocation6 + $0x80] sm:$0xff]
    %v128 = vld [vmem:[#allocation6 + $0x88] sm:$0xff]
    %v129 = vld [vmem:[#allocation6 + $0x90] sm:$0xff]
    %v130 = vld [vmem:[#allocation6 + $0x98] sm:$0xff]
    %v131 = vld [vmem:[#allocation6 + $0xa0] sm:$0xff]
    %v132 = vld [vmem:[#allocation6 + $0xa8] sm:$0xff]
    %v133 = vld [vmem:[#allocation6 + $0xb0] sm:$0xff]
    %v134 = vld [vmem:[#allocation6 + $0xb8] sm:$0xff]
    %v135 = vld [vmem:[#allocation6 + $0xc0] sm:$0xff]
    %v136 = vld [vmem:[#allocation6 + $0xc8] sm:$0xff]
    %v137 = vld [vmem:[#allocation6 + $0xd0] sm:$0xff]
    %v138 = vld [vmem:[#allocation6 + $0xd8] sm:$0xff]
    %v139 = vld [vmem:[#allocation6 + $0xe0] sm:$0xff]
    %v140 = vld [vmem:[#allocation6 + $0xe8] sm:$0xff]
    %v141 = vld [vmem:[#allocation6 + $0xf0] sm:$0xff]
    %v142 = vld [vmem:[#allocation6 + $0xf8] sm:$0xff]
    %v143 = vld [vmem:[#allocation6 + $0x100] sm:$0xff]
    %v144 = vld [vmem:[#allocation6 + $0x108] sm:$0xff]
    %v145 = vld [vmem:[#allocation6 + $0x110] sm:$0xff]
    %v146 = vld [vmem:[#allocation6 + $0x118] sm:$0xff]
    %v147 = vld [vmem:[#allocation6 + $0x120] sm:$0xff]
    %v148 = vld [vmem:[#allocation6 + $0x128] sm:$0xff]
    %v149 = vld [vmem:[#allocation6 + $0x130] sm:$0xff]
    %v150 = vld [vmem:[#allocation6 + $0x138] sm:$0xff]
    %v151 = vld [vmem:[#allocation6 + $0x140] sm:$0xff]
    %v152 = vld [vmem:[#allocation6 + $0x148] sm:$0xff]
    %v153 = vld [vmem:[#allocation6 + $0x150] sm:$0xff]
    %v154 = vld [vmem:[#allocation6 + $0x158] sm:$0xff]
    %v155 = vld [vmem:[#allocation6 + $0x160] sm:$0xff]
    %v156 = vld [vmem:[#allocation6 + $0x168] sm:$0xff]
    %v157 = vld [vmem:[#allocation6 + $0x170] sm:$0xff]
    %v158 = vld [vmem:[#allocation6 + $0x178] sm:$0xff]
    %v159 = vld [vmem:[#allocation6 + $0x180] sm:$0xff]
    %v160 = vld [vmem:[#allocation6 + $0x188] sm:$0xff]
    %v161 = vld [vmem:[#allocation6 + $0x190] sm:$0xff]
    %v162 = vld [vmem:[#allocation6 + $0x198] sm:$0xff]
    %v163 = vld [vmem:[#allocation6 + $0x1a0] sm:$0xff]
    %v164 = vld [vmem:[#allocation6 + $0x1a8] sm:$0xff]
    %v165 = vld [vmem:[#allocation6 + $0x1b0] sm:$0xff]
    %v166 = vld [vmem:[#allocation6 + $0x1b8] sm:$0xff]
    %v167 = vld [vmem:[#allocation6 + $0x1c0] sm:$0xff]
    %v168 = vld [vmem:[#allocation6 + $0x1c8] sm:$0xff]
    %v169 = vld [vmem:[#allocation6 + $0x1d0] sm:$0xff]
    %v170 = vld [vmem:[#allocation6 + $0x1d8] sm:$0xff]
    %v171 = vld [vmem:[#allocation6 + $0x1e0] sm:$0xff]
    %v172 = vld [vmem:[#allocation6 + $0x1e8] sm:$0xff]
    %v173 = vld [vmem:[#allocation6 + $0x1f0] sm:$0xff]
    %v174 = vld [vmem:[#allocation6 + $0x1f8] sm:$0xff]
    %v175 = vld [vmem:[#allocation6 + $0x200] sm:$0xff]
    %v176 = vld [vmem:[#allocation6 + $0x208] sm:$0xff]
    %v177 = vld [vmem:[#allocation6 + $0x210] sm:$0xff]
    %v178 = vld [vmem:[#allocation6 + $0x218] sm:$0xff]
    %v179 = vld [vmem:[#allocation6 + $0x220] sm:$0xff]
    %v180 = vld [vmem:[#allocation6 + $0x228] sm:$0xff]
    %v181 = vld [vmem:[#allocation6 + $0x230] sm:$0xff]
    %v182 = vld [vmem:[#allocation6 + $0x238] sm:$0xff]
    %v183 = vld [vmem:[#allocation6 + $0x240] sm:$0xff]
    %v184 = vld [vmem:[#allocation6 + $0x248] sm:$0xff]
    %v185 = vld [vmem:[#allocation6 + $0x250] sm:$0xff]
    %v186 = vld [vmem:[#allocation6 + $0x258] sm:$0xff]
    %v187 = vld [vmem:[#allocation6 + $0x260] sm:$0xff]
    %v188 = vld [vmem:[#allocation6 + $0x268] sm:$0xff]
    %v189 = vld [vmem:[#allocation6 + $0x270] sm:$0xff]
    %v190 = vld [vmem:[#allocation6 + $0x278] sm:$0xff]
    %v191 = vld [vmem:[#allocation6 + $0x280] sm:$0xff]
    %v192 = vld [vmem:[#allocation6 + $0x288] sm:$0xff]
    %v193 = vld [vmem:[#allocation6 + $0x290] sm:$0xff]
    %v194 = vld [vmem:[#allocation6 + $0x298] sm:$0xff]
    %v195 = vld [vmem:[#allocation6 + $0x2a0] sm:$0xff]
    %v196 = vld [vmem:[#allocation6 + $0x2a8] sm:$0xff]
    %v197 = vld [vmem:[#allocation6 + $0x2b0] sm:$0xff]
    %v198 = vld [vmem:[#allocation6 + $0x2b8] sm:$0xff]
    %v199 = vld [vmem:[#allocation6 + $0x2c0] sm:$0xff]
    %v200 = vld [vmem:[#allocation6 + $0x2c8] sm:$0xff]
    %v201 = vld [vmem:[#allocation6 + $0x2d0] sm:$0xff]
    %v202 = vld [vmem:[#allocation6 + $0x2d8] sm:$0xff]
    %v203 = vld [vmem:[#allocation6 + $0x2e0] sm:$0xff]
    %v204 = vld [vmem:[#allocation6 + $0x2e8] sm:$0xff]
    %v205 = vld [vmem:[#allocation6 + $0x2f0] sm:$0xff]
    %v206 = vld [vmem:[#allocation6 + $0x2f8] sm:$0xff]
    %v207 = vld [vmem:[#allocation6 + $0x300] sm:$0xff]
    %v208 = vld [vmem:[#allocation6 + $0x308] sm:$0xff]
    %v209 = vld [vmem:[#allocation6 + $0x310] sm:$0xff]
    %v210 = vld [vmem:[#allocation6 + $0x318] sm:$0xff]
    %v211 = vld [vmem:[#allocation6 + $0x320] sm:$0xff]
    %v212 = vld [vmem:[#allocation6 + $0x328] sm:$0xff]
    %v213 = vld [vmem:[#allocation6 + $0x330] sm:$0xff]
    %v214 = vld [vmem:[#allocation6 + $0x338] sm:$0xff]
    %v215 = vld [vmem:[#allocation6 + $0x340] sm:$0xff]
    %v216 = vld [vmem:[#allocation6 + $0x348] sm:$0xff]
    %v217 = vld [vmem:[#allocation6 + $0x350] sm:$0xff]
    %v218 = vld [vmem:[#allocation6 + $0x358] sm:$0xff]
    %v219 = vld [vmem:[#allocation6 + $0x360] sm:$0xff]
    %v220 = vld [vmem:[#allocation6 + $0x368] sm:$0xff]
    %v221 = vld [vmem:[#allocation6 + $0x370] sm:$0xff]
    %v222 = vld [vmem:[#allocation6 + $0x378] sm:$0xff]
    %v223 = vld [vmem:[#allocation6 + $0x380] sm:$0xff]
    %v224 = vld [vmem:[#allocation6 + $0x388] sm:$0xff]
    %v225 = vld [vmem:[#allocation6 + $0x390] sm:$0xff]
    %v226 = vld [vmem:[#allocation6 + $0x398] sm:$0xff]
    %v227 = vld [vmem:[#allocation6 + $0x3a0] sm:$0xff]
    %v228 = vld [vmem:[#allocation6 + $0x3a8] sm:$0xff]
    %v229 = vld [vmem:[#allocation6 + $0x3b0] sm:$0xff]
    %v230 = vld [vmem:[#allocation6 + $0x3b8] sm:$0xff]
    %v231 = vld [vmem:[#allocation6 + $0x3c0] sm:$0xff]
    %v232 = vld [vmem:[#allocation6 + $0x3c8] sm:$0xff]
    %v233 = vld [vmem:[#allocation6 + $0x3d0] sm:$0xff]
    %v234 = vld [vmem:[#allocation6 + $0x3d8] sm:$0xff]
    %v235 = vld [vmem:[#allocation6 + $0x3e0] sm:$0xff]
    %v236 = vld [vmem:[#allocation6 + $0x3e8] sm:$0xff]
    %v237 = vld [vmem:[#allocation6 + $0x3f0] sm:$0xff]
    %v238 = vld [vmem:[#allocation6 + $0x3f8] sm:$0xff]
    %v239 = vld [vmem:[#allocation6 + $0x400] sm:$0xff]
    %v240 = vld [vmem:[#allocation6 + $0x408] sm:$0xff]
    %v241 = vld [vmem:[#allocation6 + $0x410] sm:$0xff]
    %v242 = vld [vmem:[#allocation6 + $0x418] sm:$0xff]
    %v243 = vld [vmem:[#allocation6 + $0x420] sm:$0xff]
    %v244 = vld [vmem:[#allocation6 + $0x428] sm:$0xff]
    %v245 = vld [vmem:[#allocation6 + $0x430] sm:$0xff]
    %v246 = vld [vmem:[#allocation6 + $0x438] sm:$0xff]
    %v247 = vld [vmem:[#allocation6 + $0x440] sm:$0xff]
    %v248 = vld [vmem:[#allocation6 + $0x448] sm:$0xff]
    %v249 = vld [vmem:[#allocation6 + $0x450] sm:$0xff]
    %v250 = vld [vmem:[#allocation6 + $0x458] sm:$0xff]
    %v251 = vld [vmem:[#allocation6 + $0x460] sm:$0xff]
    %v252 = vld [vmem:[#allocation6 + $0x468] sm:$0xff]
    %v253 = vld [vmem:[#allocation6 + $0x470] sm:$0xff]
    %v254 = vld [vmem:[#allocation6 + $0x478] sm:$0xff]
    %v255 = vld [vmem:[#allocation6 + $0x480] sm:$0xff]
    %v256 = vld [vmem:[#allocation6 + $0x488] sm:$0xff]
    %v257 = vld [vmem:[#allocation6 + $0x490] sm:$0xff]
    %v258 = vld [vmem:[#allocation6 + $0x498] sm:$0xff]
    %v259 = vld [vmem:[#allocation6 + $0x4a0] sm:$0xff]
    %v260 = vld [vmem:[#allocation6 + $0x4a8] sm:$0xff]
    %v261 = vld [vmem:[#allocation6 + $0x4b0] sm:$0xff]
    %v262 = vld [vmem:[#allocation6 + $0x4b8] sm:$0xff]
    %v263 = vld [vmem:[#allocation6 + $0x4c0] sm:$0xff]
    %v264 = vld [vmem:[#allocation6 + $0x4c8] sm:$0xff]
    %v265 = vld [vmem:[#allocation6 + $0x4d0] sm:$0xff]
    %v266 = vld [vmem:[#allocation6 + $0x4d8] sm:$0xff]
    %v267 = vld [vmem:[#allocation6 + $0x4e0] sm:$0xff]
    %v268 = vld [vmem:[#allocation6 + $0x4e8] sm:$0xff]
    %v269 = vld [vmem:[#allocation6 + $0x4f0] sm:$0xff]
    %v270 = vld [vmem:[#allocation6 + $0x4f8] sm:$0xff]
    %v271 = vld [vmem:[#allocation6 + $0x500] sm:$0xff]
    %v272 = vld [vmem:[#allocation6 + $0x508] sm:$0xff]
    %v273 = vld [vmem:[#allocation6 + $0x510] sm:$0xff]
    %v274 = vld [vmem:[#allocation6 + $0x518] sm:$0xff]
    %v275 = vld [vmem:[#allocation6 + $0x520] sm:$0xff]
    %v276 = vld [vmem:[#allocation6 + $0x528] sm:$0xff]
    %v277 = vld [vmem:[#allocation6 + $0x530] sm:$0xff]
    %v278 = vld [vmem:[#allocation6 + $0x538] sm:$0xff]
    %v279 = vld [vmem:[#allocation6 + $0x540] sm:$0xff]
    %v280 = vld [vmem:[#allocation6 + $0x548] sm:$0xff]
    %v281 = vld [vmem:[#allocation6 + $0x550] sm:$0xff]
    %v282 = vld [vmem:[#allocation6 + $0x558] sm:$0xff]
    %v283 = vld [vmem:[#allocation6 + $0x560] sm:$0xff]
    %v284 = vld [vmem:[#allocation6 + $0x568] sm:$0xff]
    %v285 = vld [vmem:[#allocation6 + $0x570] sm:$0xff]
    %v286 = vld [vmem:[#allocation6 + $0x578] sm:$0xff]
    %v287 = vld [vmem:[#allocation6 + $0x580] sm:$0xff]
    %v288 = vld [vmem:[#allocation6 + $0x588] sm:$0xff]
    %v289 = vld [vmem:[#allocation6 + $0x590] sm:$0xff]
    %v290 = vld [vmem:[#allocation6 + $0x598] sm:$0xff]
    %v291 = vld [vmem:[#allocation6 + $0x5a0] sm:$0xff]
    %v292 = vld [vmem:[#allocation6 + $0x5a8] sm:$0xff]
    %v293 = vld [vmem:[#allocation6 + $0x5b0] sm:$0xff]
    %v294 = vld [vmem:[#allocation6 + $0x5b8] sm:$0xff]
    %v295 = vld [vmem:[#allocation6 + $0x5c0] sm:$0xff]
    %v296 = vld [vmem:[#allocation6 + $0x5c8] sm:$0xff]
    %v297 = vld [vmem:[#allocation6 + $0x5d0] sm:$0xff]
    %v298 = vld [vmem:[#allocation6 + $0x5d8] sm:$0xff]
    %v299 = vld [vmem:[#allocation6 + $0x5e0] sm:$0xff]
    %v300 = vld [vmem:[#allocation6 + $0x5e8] sm:$0xff]
    %v301 = vld [vmem:[#allocation6 + $0x5f0] sm:$0xff]
    %v302 = vld [vmem:[#allocation6 + $0x5f8] sm:$0xff]
    %v303 = vld [vmem:[#allocation6 + $0x600] sm:$0xff]
    %v304 = vld [vmem:[#allocation6 + $0x608] sm:$0xff]
    %v305 = vld [vmem:[#allocation6 + $0x610] sm:$0xff]
    %v306 = vld [vmem:[#allocation6 + $0x618] sm:$0xff]
    %v307 = vld [vmem:[#allocation6 + $0x620] sm:$0xff]
    %v308 = vld [vmem:[#allocation6 + $0x628] sm:$0xff]
    %v309 = vld [vmem:[#allocation6 + $0x630] sm:$0xff]
    %v310 = vld [vmem:[#allocation6 + $0x638] sm:$0xff]
    %v311 = vld [vmem:[#allocation6 + $0x640] sm:$0xff]
    %v312 = vld [vmem:[#allocation6 + $0x648] sm:$0xff]
    %v313 = vld [vmem:[#allocation6 + $0x650] sm:$0xff]
    %v314 = vld [vmem:[#allocation6 + $0x658] sm:$0xff]
    %v315 = vld [vmem:[#allocation6 + $0x660] sm:$0xff]
    %v316 = vld [vmem:[#allocation6 + $0x668] sm:$0xff]
    %v317 = vld [vmem:[#allocation6 + $0x670] sm:$0xff]
    %v318 = vld [vmem:[#allocation6 + $0x678] sm:$0xff]
    %v319 = vld [vmem:[#allocation6 + $0x680] sm:$0xff]
    %v320 = vld [vmem:[#allocation6 + $0x688] sm:$0xff]
    %v321 = vld [vmem:[#allocation6 + $0x690] sm:$0xff]
    %v322 = vld [vmem:[#allocation6 + $0x698] sm:$0xff]
    %v323 = vld [vmem:[#allocation6 + $0x6a0] sm:$0xff]
    %v324 = vld [vmem:[#allocation6 + $0x6a8] sm:$0xff]
    %v325 = vld [vmem:[#allocation6 + $0x6b0] sm:$0xff]
    %v326 = vld [vmem:[#allocation6 + $0x6b8] sm:$0xff]
    %v327 = vld [vmem:[#allocation6 + $0x6c0] sm:$0xff]
    %v328 = vld [vmem:[#allocation6 + $0x6c8] sm:$0xff]
    %v329 = vld [vmem:[#allocation6 + $0x6d0] sm:$0xff]
    %v330 = vld [vmem:[#allocation6 + $0x6d8] sm:$0xff]
    %v331 = vld [vmem:[#allocation6 + $0x6e0] sm:$0xff]
    %v332 = vld [vmem:[#allocation6 + $0x6e8] sm:$0xff]
    %v333 = vld [vmem:[#allocation6 + $0x6f0] sm:$0xff]
    %v334 = vld [vmem:[#allocation6 + $0x6f8] sm:$0xff]
    %v335 = vld [vmem:[#allocation6 + $0x700] sm:$0xff]
    %v336 = vld [vmem:[#allocation6 + $0x708] sm:$0xff]
    %v337 = vld [vmem:[#allocation6 + $0x710] sm:$0xff]
    %v338 = vld [vmem:[#allocation6 + $0x718] sm:$0xff]
    %v339 = vld [vmem:[#allocation6 + $0x720] sm:$0xff]
    %v340 = vld [vmem:[#allocation6 + $0x728] sm:$0xff]
    %v341 = vld [vmem:[#allocation6 + $0x730] sm:$0xff]
    %v342 = vld [vmem:[#allocation6 + $0x738] sm:$0xff]
    %v343 = vld [vmem:[#allocation6 + $0x740] sm:$0xff]
    %v344 = vld [vmem:[#allocation6 + $0x748] sm:$0xff]
    %v345 = vld [vmem:[#allocation6 + $0x750] sm:$0xff]
    %v346 = vld [vmem:[#allocation6 + $0x758] sm:$0xff]
    %v347 = vld [vmem:[#allocation6 + $0x760] sm:$0xff]
    %v348 = vld [vmem:[#allocation6 + $0x768] sm:$0xff]
    %v349 = vld [vmem:[#allocation6 + $0x770] sm:$0xff]
    %v350 = vld [vmem:[#allocation6 + $0x778] sm:$0xff]
    %v351 = vld [vmem:[#allocation6 + $0x780] sm:$0xff]
    %v352 = vld [vmem:[#allocation6 + $0x788] sm:$0xff]
    %v353 = vld [vmem:[#allocation6 + $0x790] sm:$0xff]
    %v354 = vld [vmem:[#allocation6 + $0x798] sm:$0xff]
    %v355 = vld [vmem:[#allocation6 + $0x7a0] sm:$0xff]
    %v356 = vld [vmem:[#allocation6 + $0x7a8] sm:$0xff]
    %v357 = vld [vmem:[#allocation6 + $0x7b0] sm:$0xff]
    %v358 = vld [vmem:[#allocation6 + $0x7b8] sm:$0xff]
    %v359 = vld [vmem:[#allocation6 + $0x7c0] sm:$0xff]
    %v360 = vld [vmem:[#allocation6 + $0x7c8] sm:$0xff]
    %v361 = vld [vmem:[#allocation6 + $0x7d0] sm:$0xff]
    %v362 = vld [vmem:[#allocation6 + $0x7d8] sm:$0xff]
    %v363 = vld [vmem:[#allocation6 + $0x7e0] sm:$0xff]
    %v364 = vld [vmem:[#allocation6 + $0x7e8] sm:$0xff]
    %v365 = vld [vmem:[#allocation6 + $0x7f0] sm:$0xff]
    %v366 = vld [vmem:[#allocation6 + $0x7f8] sm:$0xff]
    %v371 = vunpack.c.l.b16 %v107
    %v372 = vunpack.c.h.b16 %v107
    %v373 = vunpack.c.l.b16 %v108
    %v374 = vunpack.c.h.b16 %v108
    %v375 = vunpack.c.l.b16 %v109
    %v376 = vunpack.c.h.b16 %v109
    %v377 = vunpack.c.l.b16 %v110
    %v378 = vunpack.c.h.b16 %v110
    %v379 = vpack.c.b16 %v371, %v371
    %v380 = vpack.c.b16 %v372, %v372
    %v381 = vpack.c.b16 %v373, %v373
    %v382 = vpack.c.b16 %v374, %v374
    %v383 = vpack.c.b16 %v375, %v375
    %v384 = vpack.c.b16 %v376, %v376
    %v385 = vpack.c.b16 %v377, %v377
    %v386 = vpack.c.b16 %v378, %v378
    %v651 = vunpack.c.l.b16 %v111
    %v652 = vunpack.c.h.b16 %v111
    %v653 = vunpack.c.l.b16 %v112
    %v654 = vunpack.c.h.b16 %v112
    %v655 = vunpack.c.l.b16 %v113
    %v656 = vunpack.c.h.b16 %v113
    %v657 = vunpack.c.l.b16 %v114
    %v658 = vunpack.c.h.b16 %v114
    %v659 = vunpack.c.l.b16 %v115
    %v660 = vunpack.c.h.b16 %v115
    %v661 = vunpack.c.l.b16 %v116
    %v662 = vunpack.c.h.b16 %v116
    %v663 = vunpack.c.l.b16 %v117
    %v664 = vunpack.c.h.b16 %v117
    %v665 = vunpack.c.l.b16 %v118
    %v666 = vunpack.c.h.b16 %v118
    %v667 = vunpack.c.l.b16 %v119
    %v668 = vunpack.c.h.b16 %v119
    %v669 = vunpack.c.l.b16 %v120
    %v670 = vunpack.c.h.b16 %v120
    %v671 = vunpack.c.l.b16 %v121
    %v672 = vunpack.c.h.b16 %v121
    %v673 = vunpack.c.l.b16 %v122
    %v674 = vunpack.c.h.b16 %v122
    %v675 = vunpack.c.l.b16 %v123
    %v676 = vunpack.c.h.b16 %v123
    %v677 = vunpack.c.l.b16 %v124
    %v678 = vunpack.c.h.b16 %v124
    %v679 = vunpack.c.l.b16 %v125
    %v680 = vunpack.c.h.b16 %v125
    %v681 = vunpack.c.l.b16 %v126
    %v682 = vunpack.c.h.b16 %v126
    %v683 = vunpack.c.l.b16 %v127
    %v684 = vunpack.c.h.b16 %v127
    %v685 = vunpack.c.l.b16 %v128
    %v686 = vunpack.c.h.b16 %v128
    %v687 = vunpack.c.l.b16 %v129
    %v688 = vunpack.c.h.b16 %v129
    %v689 = vunpack.c.l.b16 %v130
    %v690 = vunpack.c.h.b16 %v130
    %v691 = vunpack.c.l.b16 %v131
    %v692 = vunpack.c.h.b16 %v131
    %v693 = vunpack.c.l.b16 %v132
    %v694 = vunpack.c.h.b16 %v132
    %v695 = vunpack.c.l.b16 %v133
    %v696 = vunpack.c.h.b16 %v133
    %v697 = vunpack.c.l.b16 %v134
    %v698 = vunpack.c.h.b16 %v134
    %v699 = vunpack.c.l.b16 %v135
    %v700 = vunpack.c.h.b16 %v135
    %v701 = vunpack.c.l.b16 %v136
    %v702 = vunpack.c.h.b16 %v136
    %v703 = vunpack.c.l.b16 %v137
    %v704 = vunpack.c.h.b16 %v137
    %v705 = vunpack.c.l.b16 %v138
    %v706 = vunpack.c.h.b16 %v138
    %v707 = vunpack.c.l.b16 %v139
    %v708 = vunpack.c.h.b16 %v139
    %v709 = vunpack.c.l.b16 %v140
    %v710 = vunpack.c.h.b16 %v140
    %v711 = vunpack.c.l.b16 %v141
    %v712 = vunpack.c.h.b16 %v141
    %v713 = vunpack.c.l.b16 %v142
    %v714 = vunpack.c.h.b16 %v142
    %v715 = vunpack.c.l.b16 %v143
    %v716 = vunpack.c.h.b16 %v143
    %v717 = vunpack.c.l.b16 %v144
    %v718 = vunpack.c.h.b16 %v144
    %v719 = vunpack.c.l.b16 %v145
    %v720 = vunpack.c.h.b16 %v145
    %v721 = vunpack.c.l.b16 %v146
    %v722 = vunpack.c.h.b16 %v146
    %v723 = vunpack.c.l.b16 %v147
    %v724 = vunpack.c.h.b16 %v147
    %v725 = vunpack.c.l.b16 %v148
    %v726 = vunpack.c.h.b16 %v148
    %v727 = vunpack.c.l.b16 %v149
    %v728 = vunpack.c.h.b16 %v149
    %v729 = vunpack.c.l.b16 %v150
    %v730 = vunpack.c.h.b16 %v150
    %v731 = vunpack.c.l.b16 %v151
    %v732 = vunpack.c.h.b16 %v151
    %v733 = vunpack.c.l.b16 %v152
    %v734 = vunpack.c.h.b16 %v152
    %v735 = vunpack.c.l.b16 %v153
    %v736 = vunpack.c.h.b16 %v153
    %v737 = vunpack.c.l.b16 %v154
    %v738 = vunpack.c.h.b16 %v154
    %v739 = vunpack.c.l.b16 %v155
    %v740 = vunpack.c.h.b16 %v155
    %v741 = vunpack.c.l.b16 %v156
    %v742 = vunpack.c.h.b16 %v156
    %v743 = vunpack.c.l.b16 %v157
    %v744 = vunpack.c.h.b16 %v157
    %v745 = vunpack.c.l.b16 %v158
    %v746 = vunpack.c.h.b16 %v158
    %v747 = vunpack.c.l.b16 %v159
    %v748 = vunpack.c.h.b16 %v159
    %v749 = vunpack.c.l.b16 %v160
    %v750 = vunpack.c.h.b16 %v160
    %v751 = vunpack.c.l.b16 %v161
    %v752 = vunpack.c.h.b16 %v161
    %v753 = vunpack.c.l.b16 %v162
    %v754 = vunpack.c.h.b16 %v162
    %v755 = vunpack.c.l.b16 %v163
    %v756 = vunpack.c.h.b16 %v163
    %v757 = vunpack.c.l.b16 %v164
    %v758 = vunpack.c.h.b16 %v164
    %v759 = vunpack.c.l.b16 %v165
    %v760 = vunpack.c.h.b16 %v165
    %v761 = vunpack.c.l.b16 %v166
    %v762 = vunpack.c.h.b16 %v166
    %v763 = vunpack.c.l.b16 %v167
    %v764 = vunpack.c.h.b16 %v167
    %v765 = vunpack.c.l.b16 %v168
    %v766 = vunpack.c.h.b16 %v168
    %v767 = vunpack.c.l.b16 %v169
    %v768 = vunpack.c.h.b16 %v169
    %v769 = vunpack.c.l.b16 %v170
    %v770 = vunpack.c.h.b16 %v170
    %v771 = vunpack.c.l.b16 %v171
    %v772 = vunpack.c.h.b16 %v171
    %v773 = vunpack.c.l.b16 %v172
    %v774 = vunpack.c.h.b16 %v172
    %v775 = vunpack.c.l.b16 %v173
    %v776 = vunpack.c.h.b16 %v173
    %v777 = vunpack.c.l.b16 %v174
    %v778 = vunpack.c.h.b16 %v174
    %v779 = vunpack.c.l.b16 %v175
    %v780 = vunpack.c.h.b16 %v175
    %v781 = vunpack.c.l.b16 %v176
    %v782 = vunpack.c.h.b16 %v176
    %v783 = vunpack.c.l.b16 %v177
    %v784 = vunpack.c.h.b16 %v177
    %v785 = vunpack.c.l.b16 %v178
    %v786 = vunpack.c.h.b16 %v178
    %v787 = vunpack.c.l.b16 %v179
    %v788 = vunpack.c.h.b16 %v179
    %v789 = vunpack.c.l.b16 %v180
    %v790 = vunpack.c.h.b16 %v180
    %v791 = vunpack.c.l.b16 %v181
    %v792 = vunpack.c.h.b16 %v181
    %v793 = vunpack.c.l.b16 %v182
    %v794 = vunpack.c.h.b16 %v182
    %v795 = vunpack.c.l.b16 %v183
    %v796 = vunpack.c.h.b16 %v183
    %v797 = vunpack.c.l.b16 %v184
    %v798 = vunpack.c.h.b16 %v184
    %v799 = vunpack.c.l.b16 %v185
    %v800 = vunpack.c.h.b16 %v185
    %v801 = vunpack.c.l.b16 %v186
    %v802 = vunpack.c.h.b16 %v186
    %v803 = vunpack.c.l.b16 %v187
    %v804 = vunpack.c.h.b16 %v187
    %v805 = vunpack.c.l.b16 %v188
    %v806 = vunpack.c.h.b16 %v188
    %v807 = vunpack.c.l.b16 %v189
    %v808 = vunpack.c.h.b16 %v189
    %v809 = vunpack.c.l.b16 %v190
    %v810 = vunpack.c.h.b16 %v190
    %v811 = vunpack.c.l.b16 %v191
    %v812 = vunpack.c.h.b16 %v191
    %v813 = vunpack.c.l.b16 %v192
    %v814 = vunpack.c.h.b16 %v192
    %v815 = vunpack.c.l.b16 %v193
    %v816 = vunpack.c.h.b16 %v193
    %v817 = vunpack.c.l.b16 %v194
    %v818 = vunpack.c.h.b16 %v194
    %v819 = vunpack.c.l.b16 %v195
    %v820 = vunpack.c.h.b16 %v195
    %v821 = vunpack.c.l.b16 %v196
    %v822 = vunpack.c.h.b16 %v196
    %v823 = vunpack.c.l.b16 %v197
    %v824 = vunpack.c.h.b16 %v197
    %v825 = vunpack.c.l.b16 %v198
    %v826 = vunpack.c.h.b16 %v198
    %v827 = vunpack.c.l.b16 %v199
    %v828 = vunpack.c.h.b16 %v199
    %v829 = vunpack.c.l.b16 %v200
    %v830 = vunpack.c.h.b16 %v200
    %v831 = vunpack.c.l.b16 %v201
    %v832 = vunpack.c.h.b16 %v201
    %v833 = vunpack.c.l.b16 %v202
    %v834 = vunpack.c.h.b16 %v202
    %v835 = vunpack.c.l.b16 %v203
    %v836 = vunpack.c.h.b16 %v203
    %v837 = vunpack.c.l.b16 %v204
    %v838 = vunpack.c.h.b16 %v204
    %v839 = vunpack.c.l.b16 %v205
    %v840 = vunpack.c.h.b16 %v205
    %v841 = vunpack.c.l.b16 %v206
    %v842 = vunpack.c.h.b16 %v206
    %v843 = vunpack.c.l.b16 %v207
    %v844 = vunpack.c.h.b16 %v207
    %v845 = vunpack.c.l.b16 %v208
    %v846 = vunpack.c.h.b16 %v208
    %v847 = vunpack.c.l.b16 %v209
    %v848 = vunpack.c.h.b16 %v209
    %v849 = vunpack.c.l.b16 %v210
    %v850 = vunpack.c.h.b16 %v210
    %v851 = vunpack.c.l.b16 %v211
    %v852 = vunpack.c.h.b16 %v211
    %v853 = vunpack.c.l.b16 %v212
    %v854 = vunpack.c.h.b16 %v212
    %v855 = vunpack.c.l.b16 %v213
    %v856 = vunpack.c.h.b16 %v213
    %v857 = vunpack.c.l.b16 %v214
    %v858 = vunpack.c.h.b16 %v214
    %v859 = vunpack.c.l.b16 %v215
    %v860 = vunpack.c.h.b16 %v215
    %v861 = vunpack.c.l.b16 %v216
    %v862 = vunpack.c.h.b16 %v216
    %v863 = vunpack.c.l.b16 %v217
    %v864 = vunpack.c.h.b16 %v217
    %v865 = vunpack.c.l.b16 %v218
    %v866 = vunpack.c.h.b16 %v218
    %v867 = vunpack.c.l.b16 %v219
    %v868 = vunpack.c.h.b16 %v219
    %v869 = vunpack.c.l.b16 %v220
    %v870 = vunpack.c.h.b16 %v220
    %v871 = vunpack.c.l.b16 %v221
    %v872 = vunpack.c.h.b16 %v221
    %v873 = vunpack.c.l.b16 %v222
    %v874 = vunpack.c.h.b16 %v222
    %v875 = vunpack.c.l.b16 %v223
    %v876 = vunpack.c.h.b16 %v223
    %v877 = vunpack.c.l.b16 %v224
    %v878 = vunpack.c.h.b16 %v224
    %v879 = vunpack.c.l.b16 %v225
    %v880 = vunpack.c.h.b16 %v225
    %v881 = vunpack.c.l.b16 %v226
    %v882 = vunpack.c.h.b16 %v226
    %v883 = vunpack.c.l.b16 %v227
    %v884 = vunpack.c.h.b16 %v227
    %v885 = vunpack.c.l.b16 %v228
    %v886 = vunpack.c.h.b16 %v228
    %v887 = vunpack.c.l.b16 %v229
    %v888 = vunpack.c.h.b16 %v229
    %v889 = vunpack.c.l.b16 %v230
    %v890 = vunpack.c.h.b16 %v230
    %v891 = vunpack.c.l.b16 %v231
    %v892 = vunpack.c.h.b16 %v231
    %v893 = vunpack.c.l.b16 %v232
    %v894 = vunpack.c.h.b16 %v232
    %v895 = vunpack.c.l.b16 %v233
    %v896 = vunpack.c.h.b16 %v233
    %v897 = vunpack.c.l.b16 %v234
    %v898 = vunpack.c.h.b16 %v234
    %v899 = vunpack.c.l.b16 %v235
    %v900 = vunpack.c.h.b16 %v235
    %v901 = vunpack.c.l.b16 %v236
    %v902 = vunpack.c.h.b16 %v236
    %v903 = vunpack.c.l.b16 %v237
    %v904 = vunpack.c.h.b16 %v237
    %v905 = vunpack.c.l.b16 %v238
    %v906 = vunpack.c.h.b16 %v238
    %v907 = vunpack.c.l.b16 %v239
    %v908 = vunpack.c.h.b16 %v239
    %v909 = vunpack.c.l.b16 %v240
    %v910 = vunpack.c.h.b16 %v240
    %v911 = vunpack.c.l.b16 %v241
    %v912 = vunpack.c.h.b16 %v241
    %v913 = vunpack.c.l.b16 %v242
    %v914 = vunpack.c.h.b16 %v242
    %v915 = vunpack.c.l.b16 %v243
    %v916 = vunpack.c.h.b16 %v243
    %v917 = vunpack.c.l.b16 %v244
    %v918 = vunpack.c.h.b16 %v244
    %v919 = vunpack.c.l.b16 %v245
    %v920 = vunpack.c.h.b16 %v245
    %v921 = vunpack.c.l.b16 %v246
    %v922 = vunpack.c.h.b16 %v246
    %v923 = vunpack.c.l.b16 %v247
    %v924 = vunpack.c.h.b16 %v247
    %v925 = vunpack.c.l.b16 %v248
    %v926 = vunpack.c.h.b16 %v248
    %v927 = vunpack.c.l.b16 %v249
    %v928 = vunpack.c.h.b16 %v249
    %v929 = vunpack.c.l.b16 %v250
    %v930 = vunpack.c.h.b16 %v250
    %v931 = vunpack.c.l.b16 %v251
    %v932 = vunpack.c.h.b16 %v251
    %v933 = vunpack.c.l.b16 %v252
    %v934 = vunpack.c.h.b16 %v252
    %v935 = vunpack.c.l.b16 %v253
    %v936 = vunpack.c.h.b16 %v253
    %v937 = vunpack.c.l.b16 %v254
    %v938 = vunpack.c.h.b16 %v254
    %v939 = vunpack.c.l.b16 %v255
    %v940 = vunpack.c.h.b16 %v255
    %v941 = vunpack.c.l.b16 %v256
    %v942 = vunpack.c.h.b16 %v256
    %v943 = vunpack.c.l.b16 %v257
    %v944 = vunpack.c.h.b16 %v257
    %v945 = vunpack.c.l.b16 %v258
    %v946 = vunpack.c.h.b16 %v258
    %v947 = vunpack.c.l.b16 %v259
    %v948 = vunpack.c.h.b16 %v259
    %v949 = vunpack.c.l.b16 %v260
    %v950 = vunpack.c.h.b16 %v260
    %v951 = vunpack.c.l.b16 %v261
    %v952 = vunpack.c.h.b16 %v261
    %v953 = vunpack.c.l.b16 %v262
    %v954 = vunpack.c.h.b16 %v262
    %v955 = vunpack.c.l.b16 %v263
    %v956 = vunpack.c.h.b16 %v263
    %v957 = vunpack.c.l.b16 %v264
    %v958 = vunpack.c.h.b16 %v264
    %v959 = vunpack.c.l.b16 %v265
    %v960 = vunpack.c.h.b16 %v265
    %v961 = vunpack.c.l.b16 %v266
    %v962 = vunpack.c.h.b16 %v266
    %v963 = vunpack.c.l.b16 %v267
    %v964 = vunpack.c.h.b16 %v267
    %v965 = vunpack.c.l.b16 %v268
    %v966 = vunpack.c.h.b16 %v268
    %v967 = vunpack.c.l.b16 %v269
    %v968 = vunpack.c.h.b16 %v269
    %v969 = vunpack.c.l.b16 %v270
    %v970 = vunpack.c.h.b16 %v270
    %v971 = vunpack.c.l.b16 %v271
    %v972 = vunpack.c.h.b16 %v271
    %v973 = vunpack.c.l.b16 %v272
    %v974 = vunpack.c.h.b16 %v272
    %v975 = vunpack.c.l.b16 %v273
    %v976 = vunpack.c.h.b16 %v273
    %v977 = vunpack.c.l.b16 %v274
    %v978 = vunpack.c.h.b16 %v274
    %v979 = vunpack.c.l.b16 %v275
    %v980 = vunpack.c.h.b16 %v275
    %v981 = vunpack.c.l.b16 %v276
    %v982 = vunpack.c.h.b16 %v276
    %v983 = vunpack.c.l.b16 %v277
    %v984 = vunpack.c.h.b16 %v277
    %v985 = vunpack.c.l.b16 %v278
    %v986 = vunpack.c.h.b16 %v278
    %v987 = vunpack.c.l.b16 %v279
    %v988 = vunpack.c.h.b16 %v279
    %v989 = vunpack.c.l.b16 %v280
    %v990 = vunpack.c.h.b16 %v280
    %v991 = vunpack.c.l.b16 %v281
    %v992 = vunpack.c.h.b16 %v281
    %v993 = vunpack.c.l.b16 %v282
    %v994 = vunpack.c.h.b16 %v282
    %v995 = vunpack.c.l.b16 %v283
    %v996 = vunpack.c.h.b16 %v283
    %v997 = vunpack.c.l.b16 %v284
    %v998 = vunpack.c.h.b16 %v284
    %v999 = vunpack.c.l.b16 %v285
    %v1000 = vunpack.c.h.b16 %v285
    %v1001 = vunpack.c.l.b16 %v286
    %v1002 = vunpack.c.h.b16 %v286
    %v1003 = vunpack.c.l.b16 %v287
    %v1004 = vunpack.c.h.b16 %v287
    %v1005 = vunpack.c.l.b16 %v288
    %v1006 = vunpack.c.h.b16 %v288
    %v1007 = vunpack.c.l.b16 %v289
    %v1008 = vunpack.c.h.b16 %v289
    %v1009 = vunpack.c.l.b16 %v290
    %v1010 = vunpack.c.h.b16 %v290
    %v1011 = vunpack.c.l.b16 %v291
    %v1012 = vunpack.c.h.b16 %v291
    %v1013 = vunpack.c.l.b16 %v292
    %v1014 = vunpack.c.h.b16 %v292
    %v1015 = vunpack.c.l.b16 %v293
    %v1016 = vunpack.c.h.b16 %v293
    %v1017 = vunpack.c.l.b16 %v294
    %v1018 = vunpack.c.h.b16 %v294
    %v1019 = vunpack.c.l.b16 %v295
    %v1020 = vunpack.c.h.b16 %v295
    %v1021 = vunpack.c.l.b16 %v296
    %v1022 = vunpack.c.h.b16 %v296
    %v1023 = vunpack.c.l.b16 %v297
    %v1024 = vunpack.c.h.b16 %v297
    %v1025 = vunpack.c.l.b16 %v298
    %v1026 = vunpack.c.h.b16 %v298
    %v1027 = vunpack.c.l.b16 %v299
    %v1028 = vunpack.c.h.b16 %v299
    %v1029 = vunpack.c.l.b16 %v300
    %v1030 = vunpack.c.h.b16 %v300
    %v1031 = vunpack.c.l.b16 %v301
    %v1032 = vunpack.c.h.b16 %v301
    %v1033 = vunpack.c.l.b16 %v302
    %v1034 = vunpack.c.h.b16 %v302
    %v1035 = vunpack.c.l.b16 %v303
    %v1036 = vunpack.c.h.b16 %v303
    %v1037 = vunpack.c.l.b16 %v304
    %v1038 = vunpack.c.h.b16 %v304
    %v1039 = vunpack.c.l.b16 %v305
    %v1040 = vunpack.c.h.b16 %v305
    %v1041 = vunpack.c.l.b16 %v306
    %v1042 = vunpack.c.h.b16 %v306
    %v1043 = vunpack.c.l.b16 %v307
    %v1044 = vunpack.c.h.b16 %v307
    %v1045 = vunpack.c.l.b16 %v308
    %v1046 = vunpack.c.h.b16 %v308
    %v1047 = vunpack.c.l.b16 %v309
    %v1048 = vunpack.c.h.b16 %v309
    %v1049 = vunpack.c.l.b16 %v310
    %v1050 = vunpack.c.h.b16 %v310
    %v1051 = vunpack.c.l.b16 %v311
    %v1052 = vunpack.c.h.b16 %v311
    %v1053 = vunpack.c.l.b16 %v312
    %v1054 = vunpack.c.h.b16 %v312
    %v1055 = vunpack.c.l.b16 %v313
    %v1056 = vunpack.c.h.b16 %v313
    %v1057 = vunpack.c.l.b16 %v314
    %v1058 = vunpack.c.h.b16 %v314
    %v1059 = vunpack.c.l.b16 %v315
    %v1060 = vunpack.c.h.b16 %v315
    %v1061 = vunpack.c.l.b16 %v316
    %v1062 = vunpack.c.h.b16 %v316
    %v1063 = vunpack.c.l.b16 %v317
    %v1064 = vunpack.c.h.b16 %v317
    %v1065 = vunpack.c.l.b16 %v318
    %v1066 = vunpack.c.h.b16 %v318
    %v1067 = vunpack.c.l.b16 %v319
    %v1068 = vunpack.c.h.b16 %v319
    %v1069 = vunpack.c.l.b16 %v320
    %v1070 = vunpack.c.h.b16 %v320
    %v1071 = vunpack.c.l.b16 %v321
    %v1072 = vunpack.c.h.b16 %v321
    %v1073 = vunpack.c.l.b16 %v322
    %v1074 = vunpack.c.h.b16 %v322
    %v1075 = vunpack.c.l.b16 %v323
    %v1076 = vunpack.c.h.b16 %v323
    %v1077 = vunpack.c.l.b16 %v324
    %v1078 = vunpack.c.h.b16 %v324
    %v1079 = vunpack.c.l.b16 %v325
    %v1080 = vunpack.c.h.b16 %v325
    %v1081 = vunpack.c.l.b16 %v326
    %v1082 = vunpack.c.h.b16 %v326
    %v1083 = vunpack.c.l.b16 %v327
    %v1084 = vunpack.c.h.b16 %v327
    %v1085 = vunpack.c.l.b16 %v328
    %v1086 = vunpack.c.h.b16 %v328
    %v1087 = vunpack.c.l.b16 %v329
    %v1088 = vunpack.c.h.b16 %v329
    %v1089 = vunpack.c.l.b16 %v330
    %v1090 = vunpack.c.h.b16 %v330
    %v1091 = vunpack.c.l.b16 %v331
    %v1092 = vunpack.c.h.b16 %v331
    %v1093 = vunpack.c.l.b16 %v332
    %v1094 = vunpack.c.h.b16 %v332
    %v1095 = vunpack.c.l.b16 %v333
    %v1096 = vunpack.c.h.b16 %v333
    %v1097 = vunpack.c.l.b16 %v334
    %v1098 = vunpack.c.h.b16 %v334
    %v1099 = vunpack.c.l.b16 %v335
    %v1100 = vunpack.c.h.b16 %v335
    %v1101 = vunpack.c.l.b16 %v336
    %v1102 = vunpack.c.h.b16 %v336
    %v1103 = vunpack.c.l.b16 %v337
    %v1104 = vunpack.c.h.b16 %v337
    %v1105 = vunpack.c.l.b16 %v338
    %v1106 = vunpack.c.h.b16 %v338
    %v1107 = vunpack.c.l.b16 %v339
    %v1108 = vunpack.c.h.b16 %v339
    %v1109 = vunpack.c.l.b16 %v340
    %v1110 = vunpack.c.h.b16 %v340
    %v1111 = vunpack.c.l.b16 %v341
    %v1112 = vunpack.c.h.b16 %v341
    %v1113 = vunpack.c.l.b16 %v342
    %v1114 = vunpack.c.h.b16 %v342
    %v1115 = vunpack.c.l.b16 %v343
    %v1116 = vunpack.c.h.b16 %v343
    %v1117 = vunpack.c.l.b16 %v344
    %v1118 = vunpack.c.h.b16 %v344
    %v1119 = vunpack.c.l.b16 %v345
    %v1120 = vunpack.c.h.b16 %v345
    %v1121 = vunpack.c.l.b16 %v346
    %v1122 = vunpack.c.h.b16 %v346
    %v1123 = vunpack.c.l.b16 %v347
    %v1124 = vunpack.c.h.b16 %v347
    %v1125 = vunpack.c.l.b16 %v348
    %v1126 = vunpack.c.h.b16 %v348
    %v1127 = vunpack.c.l.b16 %v349
    %v1128 = vunpack.c.h.b16 %v349
    %v1129 = vunpack.c.l.b16 %v350
    %v1130 = vunpack.c.h.b16 %v350
    %v1131 = vunpack.c.l.b16 %v351
    %v1132 = vunpack.c.h.b16 %v351
    %v1133 = vunpack.c.l.b16 %v352
    %v1134 = vunpack.c.h.b16 %v352
    %v1135 = vunpack.c.l.b16 %v353
    %v1136 = vunpack.c.h.b16 %v353
    %v1137 = vunpack.c.l.b16 %v354
    %v1138 = vunpack.c.h.b16 %v354
    %v1139 = vunpack.c.l.b16 %v355
    %v1140 = vunpack.c.h.b16 %v355
    %v1141 = vunpack.c.l.b16 %v356
    %v1142 = vunpack.c.h.b16 %v356
    %v1143 = vunpack.c.l.b16 %v357
    %v1144 = vunpack.c.h.b16 %v357
    %v1145 = vunpack.c.l.b16 %v358
    %v1146 = vunpack.c.h.b16 %v358
    %v1147 = vunpack.c.l.b16 %v359
    %v1148 = vunpack.c.h.b16 %v359
    %v1149 = vunpack.c.l.b16 %v360
    %v1150 = vunpack.c.h.b16 %v360
    %v1151 = vunpack.c.l.b16 %v361
    %v1152 = vunpack.c.h.b16 %v361
    %v1153 = vunpack.c.l.b16 %v362
    %v1154 = vunpack.c.h.b16 %v362
    %v1155 = vunpack.c.l.b16 %v363
    %v1156 = vunpack.c.h.b16 %v363
    %v1157 = vunpack.c.l.b16 %v364
    %v1158 = vunpack.c.h.b16 %v364
    %v1159 = vunpack.c.l.b16 %v365
    %v1160 = vunpack.c.h.b16 %v365
    %v1161 = vunpack.c.l.b16 %v366
    %v1162 = vunpack.c.h.b16 %v366
    %v1163 = vpack.c.b16 %v655, %v651
    %v1164 = vpack.c.b16 %v656, %v652
    %v1165 = vpack.c.b16 %v657, %v653
    %v1166 = vpack.c.b16 %v658, %v654
    %v1167 = vpack.c.b16 %v663, %v659
    %v1168 = vpack.c.b16 %v664, %v660
    %v1169 = vpack.c.b16 %v665, %v661
    %v1170 = vpack.c.b16 %v666, %v662
    %v1171 = vpack.c.b16 %v671, %v667
    %v1172 = vpack.c.b16 %v672, %v668
    %v1173 = vpack.c.b16 %v673, %v669
    %v1174 = vpack.c.b16 %v674, %v670
    %v1175 = vpack.c.b16 %v679, %v675
    %v1176 = vpack.c.b16 %v680, %v676
    %v1177 = vpack.c.b16 %v681, %v677
    %v1178 = vpack.c.b16 %v682, %v678
    %v1179 = vpack.c.b16 %v687, %v683
    %v1180 = vpack.c.b16 %v688, %v684
    %v1181 = vpack.c.b16 %v689, %v685
    %v1182 = vpack.c.b16 %v690, %v686
    %v1183 = vpack.c.b16 %v695, %v691
    %v1184 = vpack.c.b16 %v696, %v692
    %v1185 = vpack.c.b16 %v697, %v693
    %v1186 = vpack.c.b16 %v698, %v694
    %v1187 = vpack.c.b16 %v703, %v699
    %v1188 = vpack.c.b16 %v704, %v700
    %v1189 = vpack.c.b16 %v705, %v701
    %v1190 = vpack.c.b16 %v706, %v702
    %v1191 = vpack.c.b16 %v711, %v707
    %v1192 = vpack.c.b16 %v712, %v708
    %v1193 = vpack.c.b16 %v713, %v709
    %v1194 = vpack.c.b16 %v714, %v710
    %v1195 = vpack.c.b16 %v719, %v715
    %v1196 = vpack.c.b16 %v720, %v716
    %v1197 = vpack.c.b16 %v721, %v717
    %v1198 = vpack.c.b16 %v722, %v718
    %v1199 = vpack.c.b16 %v727, %v723
    %v1200 = vpack.c.b16 %v728, %v724
    %v1201 = vpack.c.b16 %v729, %v725
    %v1202 = vpack.c.b16 %v730, %v726
    %v1203 = vpack.c.b16 %v735, %v731
    %v1204 = vpack.c.b16 %v736, %v732
    %v1205 = vpack.c.b16 %v737, %v733
    %v1206 = vpack.c.b16 %v738, %v734
    %v1207 = vpack.c.b16 %v743, %v739
    %v1208 = vpack.c.b16 %v744, %v740
    %v1209 = vpack.c.b16 %v745, %v741
    %v1210 = vpack.c.b16 %v746, %v742
    %v1211 = vpack.c.b16 %v751, %v747
    %v1212 = vpack.c.b16 %v752, %v748
    %v1213 = vpack.c.b16 %v753, %v749
    %v1214 = vpack.c.b16 %v754, %v750
    %v1215 = vpack.c.b16 %v759, %v755
    %v1216 = vpack.c.b16 %v760, %v756
    %v1217 = vpack.c.b16 %v761, %v757
    %v1218 = vpack.c.b16 %v762, %v758
    %v1219 = vpack.c.b16 %v767, %v763
    %v1220 = vpack.c.b16 %v768, %v764
    %v1221 = vpack.c.b16 %v769, %v765
    %v1222 = vpack.c.b16 %v770, %v766
    %v1223 = vpack.c.b16 %v775, %v771
    %v1224 = vpack.c.b16 %v776, %v772
    %v1225 = vpack.c.b16 %v777, %v773
    %v1226 = vpack.c.b16 %v778, %v774
    %v1227 = vpack.c.b16 %v783, %v779
    %v1228 = vpack.c.b16 %v784, %v780
    %v1229 = vpack.c.b16 %v785, %v781
    %v1230 = vpack.c.b16 %v786, %v782
    %v1231 = vpack.c.b16 %v791, %v787
    %v1232 = vpack.c.b16 %v792, %v788
    %v1233 = vpack.c.b16 %v793, %v789
    %v1234 = vpack.c.b16 %v794, %v790
    %v1235 = vpack.c.b16 %v799, %v795
    %v1236 = vpack.c.b16 %v800, %v796
    %v1237 = vpack.c.b16 %v801, %v797
    %v1238 = vpack.c.b16 %v802, %v798
    %v1239 = vpack.c.b16 %v807, %v803
    %v1240 = vpack.c.b16 %v808, %v804
    %v1241 = vpack.c.b16 %v809, %v805
    %v1242 = vpack.c.b16 %v810, %v806
    %v1243 = vpack.c.b16 %v815, %v811
    %v1244 = vpack.c.b16 %v816, %v812
    %v1245 = vpack.c.b16 %v817, %v813
    %v1246 = vpack.c.b16 %v818, %v814
    %v1247 = vpack.c.b16 %v823, %v819
    %v1248 = vpack.c.b16 %v824, %v820
    %v1249 = vpack.c.b16 %v825, %v821
    %v1250 = vpack.c.b16 %v826, %v822
    %v1251 = vpack.c.b16 %v831, %v827
    %v1252 = vpack.c.b16 %v832, %v828
    %v1253 = vpack.c.b16 %v833, %v829
    %v1254 = vpack.c.b16 %v834, %v830
    %v1255 = vpack.c.b16 %v839, %v835
    %v1256 = vpack.c.b16 %v840, %v836
    %v1257 = vpack.c.b16 %v841, %v837
    %v1258 = vpack.c.b16 %v842, %v838
    %v1259 = vpack.c.b16 %v847, %v843
    %v1260 = vpack.c.b16 %v848, %v844
    %v1261 = vpack.c.b16 %v849, %v845
    %v1262 = vpack.c.b16 %v850, %v846
    %v1263 = vpack.c.b16 %v855, %v851
    %v1264 = vpack.c.b16 %v856, %v852
    %v1265 = vpack.c.b16 %v857, %v853
    %v1266 = vpack.c.b16 %v858, %v854
    %v1267 = vpack.c.b16 %v863, %v859
    %v1268 = vpack.c.b16 %v864, %v860
    %v1269 = vpack.c.b16 %v865, %v861
    %v1270 = vpack.c.b16 %v866, %v862
    %v1271 = vpack.c.b16 %v871, %v867
    %v1272 = vpack.c.b16 %v872, %v868
    %v1273 = vpack.c.b16 %v873, %v869
    %v1274 = vpack.c.b16 %v874, %v870
    %v1275 = vpack.c.b16 %v879, %v875
    %v1276 = vpack.c.b16 %v880, %v876
    %v1277 = vpack.c.b16 %v881, %v877
    %v1278 = vpack.c.b16 %v882, %v878
    %v1279 = vpack.c.b16 %v887, %v883
    %v1280 = vpack.c.b16 %v888, %v884
    %v1281 = vpack.c.b16 %v889, %v885
    %v1282 = vpack.c.b16 %v890, %v886
    %v1283 = vpack.c.b16 %v895, %v891
    %v1284 = vpack.c.b16 %v896, %v892
    %v1285 = vpack.c.b16 %v897, %v893
    %v1286 = vpack.c.b16 %v898, %v894
    %v1287 = vpack.c.b16 %v903, %v899
    %v1288 = vpack.c.b16 %v904, %v900
    %v1289 = vpack.c.b16 %v905, %v901
    %v1290 = vpack.c.b16 %v906, %v902
    %v1291 = vpack.c.b16 %v911, %v907
    %v1292 = vpack.c.b16 %v912, %v908
    %v1293 = vpack.c.b16 %v913, %v909
    %v1294 = vpack.c.b16 %v914, %v910
    %v1295 = vpack.c.b16 %v919, %v915
    %v1296 = vpack.c.b16 %v920, %v916
    %v1297 = vpack.c.b16 %v921, %v917
    %v1298 = vpack.c.b16 %v922, %v918
    %v1299 = vpack.c.b16 %v927, %v923
    %v1300 = vpack.c.b16 %v928, %v924
    %v1301 = vpack.c.b16 %v929, %v925
    %v1302 = vpack.c.b16 %v930, %v926
    %v1303 = vpack.c.b16 %v935, %v931
    %v1304 = vpack.c.b16 %v936, %v932
    %v1305 = vpack.c.b16 %v937, %v933
    %v1306 = vpack.c.b16 %v938, %v934
    %v1307 = vpack.c.b16 %v943, %v939
    %v1308 = vpack.c.b16 %v944, %v940
    %v1309 = vpack.c.b16 %v945, %v941
    %v1310 = vpack.c.b16 %v946, %v942
    %v1311 = vpack.c.b16 %v951, %v947
    %v1312 = vpack.c.b16 %v952, %v948
    %v1313 = vpack.c.b16 %v953, %v949
    %v1314 = vpack.c.b16 %v954, %v950
    %v1315 = vpack.c.b16 %v959, %v955
    %v1316 = vpack.c.b16 %v960, %v956
    %v1317 = vpack.c.b16 %v961, %v957
    %v1318 = vpack.c.b16 %v962, %v958
    %v1319 = vpack.c.b16 %v967, %v963
    %v1320 = vpack.c.b16 %v968, %v964
    %v1321 = vpack.c.b16 %v969, %v965
    %v1322 = vpack.c.b16 %v970, %v966
    %v1323 = vpack.c.b16 %v975, %v971
    %v1324 = vpack.c.b16 %v976, %v972
    %v1325 = vpack.c.b16 %v977, %v973
    %v1326 = vpack.c.b16 %v978, %v974
    %v1327 = vpack.c.b16 %v983, %v979
    %v1328 = vpack.c.b16 %v984, %v980
    %v1329 = vpack.c.b16 %v985, %v981
    %v1330 = vpack.c.b16 %v986, %v982
    %v1331 = vpack.c.b16 %v991, %v987
    %v1332 = vpack.c.b16 %v992, %v988
    %v1333 = vpack.c.b16 %v993, %v989
    %v1334 = vpack.c.b16 %v994, %v990
    %v1335 = vpack.c.b16 %v999, %v995
    %v1336 = vpack.c.b16 %v1000, %v996
    %v1337 = vpack.c.b16 %v1001, %v997
    %v1338 = vpack.c.b16 %v1002, %v998
    %v1339 = vpack.c.b16 %v1007, %v1003
    %v1340 = vpack.c.b16 %v1008, %v1004
    %v1341 = vpack.c.b16 %v1009, %v1005
    %v1342 = vpack.c.b16 %v1010, %v1006
    %v1343 = vpack.c.b16 %v1015, %v1011
    %v1344 = vpack.c.b16 %v1016, %v1012
    %v1345 = vpack.c.b16 %v1017, %v1013
    %v1346 = vpack.c.b16 %v1018, %v1014
    %v1347 = vpack.c.b16 %v1023, %v1019
    %v1348 = vpack.c.b16 %v1024, %v1020
    %v1349 = vpack.c.b16 %v1025, %v1021
    %v1350 = vpack.c.b16 %v1026, %v1022
    %v1351 = vpack.c.b16 %v1031, %v1027
    %v1352 = vpack.c.b16 %v1032, %v1028
    %v1353 = vpack.c.b16 %v1033, %v1029
    %v1354 = vpack.c.b16 %v1034, %v1030
    %v1355 = vpack.c.b16 %v1039, %v1035
    %v1356 = vpack.c.b16 %v1040, %v1036
    %v1357 = vpack.c.b16 %v1041, %v1037
    %v1358 = vpack.c.b16 %v1042, %v1038
    %v1359 = vpack.c.b16 %v1047, %v1043
    %v1360 = vpack.c.b16 %v1048, %v1044
    %v1361 = vpack.c.b16 %v1049, %v1045
    %v1362 = vpack.c.b16 %v1050, %v1046
    %v1363 = vpack.c.b16 %v1055, %v1051
    %v1364 = vpack.c.b16 %v1056, %v1052
    %v1365 = vpack.c.b16 %v1057, %v1053
    %v1366 = vpack.c.b16 %v1058, %v1054
    %v1367 = vpack.c.b16 %v1063, %v1059
    %v1368 = vpack.c.b16 %v1064, %v1060
    %v1369 = vpack.c.b16 %v1065, %v1061
    %v1370 = vpack.c.b16 %v1066, %v1062
    %v1371 = vpack.c.b16 %v1071, %v1067
    %v1372 = vpack.c.b16 %v1072, %v1068
    %v1373 = vpack.c.b16 %v1073, %v1069
    %v1374 = vpack.c.b16 %v1074, %v1070
    %v1375 = vpack.c.b16 %v1079, %v1075
    %v1376 = vpack.c.b16 %v1080, %v1076
    %v1377 = vpack.c.b16 %v1081, %v1077
    %v1378 = vpack.c.b16 %v1082, %v1078
    %v1379 = vpack.c.b16 %v1087, %v1083
    %v1380 = vpack.c.b16 %v1088, %v1084
    %v1381 = vpack.c.b16 %v1089, %v1085
    %v1382 = vpack.c.b16 %v1090, %v1086
    %v1383 = vpack.c.b16 %v1095, %v1091
    %v1384 = vpack.c.b16 %v1096, %v1092
    %v1385 = vpack.c.b16 %v1097, %v1093
    %v1386 = vpack.c.b16 %v1098, %v1094
    %v1387 = vpack.c.b16 %v1103, %v1099
    %v1388 = vpack.c.b16 %v1104, %v1100
    %v1389 = vpack.c.b16 %v1105, %v1101
    %v1390 = vpack.c.b16 %v1106, %v1102
    %v1391 = vpack.c.b16 %v1111, %v1107
    %v1392 = vpack.c.b16 %v1112, %v1108
    %v1393 = vpack.c.b16 %v1113, %v1109
    %v1394 = vpack.c.b16 %v1114, %v1110
    %v1395 = vpack.c.b16 %v1119, %v1115
    %v1396 = vpack.c.b16 %v1120, %v1116
    %v1397 = vpack.c.b16 %v1121, %v1117
    %v1398 = vpack.c.b16 %v1122, %v1118
    %v1399 = vpack.c.b16 %v1127, %v1123
    %v1400 = vpack.c.b16 %v1128, %v1124
    %v1401 = vpack.c.b16 %v1129, %v1125
    %v1402 = vpack.c.b16 %v1130, %v1126
    %v1403 = vpack.c.b16 %v1135, %v1131
    %v1404 = vpack.c.b16 %v1136, %v1132
    %v1405 = vpack.c.b16 %v1137, %v1133
    %v1406 = vpack.c.b16 %v1138, %v1134
    %v1407 = vpack.c.b16 %v1143, %v1139
    %v1408 = vpack.c.b16 %v1144, %v1140
    %v1409 = vpack.c.b16 %v1145, %v1141
    %v1410 = vpack.c.b16 %v1146, %v1142
    %v1411 = vpack.c.b16 %v1151, %v1147
    %v1412 = vpack.c.b16 %v1152, %v1148
    %v1413 = vpack.c.b16 %v1153, %v1149
    %v1414 = vpack.c.b16 %v1154, %v1150
    %v1415 = vpack.c.b16 %v1159, %v1155
    %v1416 = vpack.c.b16 %v1160, %v1156
    %v1417 = vpack.c.b16 %v1161, %v1157
    %v1418 = vpack.c.b16 %v1162, %v1158
    %1675 = vmatprep.subr.bf16.mxu0 %v1192
    %1676 = vmatpush1.bf16.msra.mxu0 %v1191
    %1677 = vmatprep.subr.bf16.mxu0 %v1188
    %1678 = vmatpush1.bf16.msra.mxu0 %v1187
    %1679 = vmatprep.subr.bf16.mxu0 %v1184
    %1680 = vmatpush1.bf16.msra.mxu0 %v1183
    %1681 = vmatprep.subr.bf16.mxu0 %v1180
    %1682 = vmatpush1.bf16.msra.mxu0 %v1179
    %1683 = vmatprep.subr.bf16.mxu0 %v1176
    %1684 = vmatpush1.bf16.msra.mxu0 %v1175
    %1685 = vmatprep.subr.bf16.mxu0 %v1172
    %1686 = vmatpush1.bf16.msra.mxu0 %v1171
    %1687 = vmatprep.subr.bf16.mxu0 %v1168
    %1688 = vmatpush1.bf16.msra.mxu0 %v1167
    %1689 = vmatprep.subr.bf16.mxu0 %v1164
    %1690 = vmatpush1.bf16.msra.mxu0 %v1163
    %1691 = vmatprep.subr.bf16.mxu0 %v1224
    %1692 = vmatpush2.bf16.msra.mxu0 %v1223
    %1693 = vmatprep.subr.bf16.mxu0 %v1220
    %1694 = vmatpush2.bf16.msra.mxu0 %v1219
    %1695 = vmatprep.subr.bf16.mxu0 %v1216
    %1696 = vmatpush2.bf16.msra.mxu0 %v1215
    %1697 = vmatprep.subr.bf16.mxu0 %v1212
    %1698 = vmatpush2.bf16.msra.mxu0 %v1211
    %1699 = vmatprep.subr.bf16.mxu0 %v1208
    %1700 = vmatpush2.bf16.msra.mxu0 %v1207
    %1701 = vmatprep.subr.bf16.mxu0 %v1204
    %1702 = vmatpush2.bf16.msra.mxu0 %v1203
    %1703 = vmatprep.subr.bf16.mxu0 %v1200
    %1704 = vmatpush2.bf16.msra.mxu0 %v1199
    %1705 = vmatprep.subr.bf16.mxu0 %v1196
    %1706 = vmatpush2.bf16.msra.mxu0 %v1195
    %1707 = vmatprep.mubr.bf16.mxu0 %v380
    %1708 = vmatmul.mubr.bf16.gmra.mxu0 %v379
    %v1709 = vpop.f32.mrf.mxu0
    %v1710 = vadd.f32 0.0, %v1709
    %v1711 = vpop.f32.mrf.mxu0
    %v1712 = vadd.f32 0.0, %v1711
    %v1713 = vpop.f32.mrf.mxu0
    %v1714 = vpop.f32.mrf.mxu0
    %1715 = vdwg.mxu0
    %1716 = vmatprep.subr.bf16.mxu0 %v1256
    %1717 = vmatpush1.bf16.msra.mxu0 %v1255
    %1718 = vmatprep.subr.bf16.mxu0 %v1252
    %1719 = vmatpush1.bf16.msra.mxu0 %v1251
    %1720 = vmatprep.subr.bf16.mxu0 %v1248
    %1721 = vmatpush1.bf16.msra.mxu0 %v1247
    %1722 = vmatprep.subr.bf16.mxu0 %v1244
    %1723 = vmatpush1.bf16.msra.mxu0 %v1243
    %1724 = vmatprep.subr.bf16.mxu0 %v1240
    %1725 = vmatpush1.bf16.msra.mxu0 %v1239
    %1726 = vmatprep.subr.bf16.mxu0 %v1236
    %1727 = vmatpush1.bf16.msra.mxu0 %v1235
    %1728 = vmatprep.subr.bf16.mxu0 %v1232
    %1729 = vmatpush1.bf16.msra.mxu0 %v1231
    %1730 = vmatprep.subr.bf16.mxu0 %v1228
    %1731 = vmatpush1.bf16.msra.mxu0 %v1227
    %1732 = vmatprep.subr.bf16.mxu0 %v1288
    %1733 = vmatpush2.bf16.msra.mxu0 %v1287
    %1734 = vmatprep.subr.bf16.mxu0 %v1284
    %1735 = vmatpush2.bf16.msra.mxu0 %v1283
    %1736 = vmatprep.subr.bf16.mxu0 %v1280
    %1737 = vmatpush2.bf16.msra.mxu0 %v1279
    %1738 = vmatprep.subr.bf16.mxu0 %v1276
    %1739 = vmatpush2.bf16.msra.mxu0 %v1275
    %1740 = vmatprep.subr.bf16.mxu0 %v1272
    %1741 = vmatpush2.bf16.msra.mxu0 %v1271
    %1742 = vmatprep.subr.bf16.mxu0 %v1268
    %1743 = vmatpush2.bf16.msra.mxu0 %v1267
    %1744 = vmatprep.subr.bf16.mxu0 %v1264
    %1745 = vmatpush2.bf16.msra.mxu0 %v1263
    %1746 = vmatprep.subr.bf16.mxu0 %v1260
    %1747 = vmatpush2.bf16.msra.mxu0 %v1259
    %1748 = vmatprep.mubr.bf16.mxu0 %v382
    %1749 = vmatmul.mubr.bf16.gmra.mxu0 %v381
    %v1750 = vpop.f32.mrf.mxu0
    %v1751 = vadd.f32 %v1710, %v1750
    %v1752 = vpop.f32.mrf.mxu0
    %v1753 = vadd.f32 %v1712, %v1752
    %v1754 = vpop.f32.mrf.mxu0
    %v1755 = vpop.f32.mrf.mxu0
    %1756 = vdwg.mxu0
    %1757 = vmatprep.subr.bf16.mxu0 %v1320
    %1758 = vmatpush1.bf16.msra.mxu0 %v1319
    %1759 = vmatprep.subr.bf16.mxu0 %v1316
    %1760 = vmatpush1.bf16.msra.mxu0 %v1315
    %1761 = vmatprep.subr.bf16.mxu0 %v1312
    %1762 = vmatpush1.bf16.msra.mxu0 %v1311
    %1763 = vmatprep.subr.bf16.mxu0 %v1308
    %1764 = vmatpush1.bf16.msra.mxu0 %v1307
    %1765 = vmatprep.subr.bf16.mxu0 %v1304
    %1766 = vmatpush1.bf16.msra.mxu0 %v1303
    %1767 = vmatprep.subr.bf16.mxu0 %v1300
    %1768 = vmatpush1.bf16.msra.mxu0 %v1299
    %1769 = vmatprep.subr.bf16.mxu0 %v1296
    %1770 = vmatpush1.bf16.msra.mxu0 %v1295
    %1771 = vmatprep.subr.bf16.mxu0 %v1292
    %1772 = vmatpush1.bf16.msra.mxu0 %v1291
    %1773 = vmatprep.subr.bf16.mxu0 %v1352
    %1774 = vmatpush2.bf16.msra.mxu0 %v1351
    %1775 = vmatprep.subr.bf16.mxu0 %v1348
    %1776 = vmatpush2.bf16.msra.mxu0 %v1347
    %1777 = vmatprep.subr.bf16.mxu0 %v1344
    %1778 = vmatpush2.bf16.msra.mxu0 %v1343
    %1779 = vmatprep.subr.bf16.mxu0 %v1340
    %1780 = vmatpush2.bf16.msra.mxu0 %v1339
    %1781 = vmatprep.subr.bf16.mxu0 %v1336
    %1782 = vmatpush2.bf16.msra.mxu0 %v1335
    %1783 = vmatprep.subr.bf16.mxu0 %v1332
    %1784 = vmatpush2.bf16.msra.mxu0 %v1331
    %1785 = vmatprep.subr.bf16.mxu0 %v1328
    %1786 = vmatpush2.bf16.msra.mxu0 %v1327
    %1787 = vmatprep.subr.bf16.mxu0 %v1324
    %1788 = vmatpush2.bf16.msra.mxu0 %v1323
    %1789 = vmatprep.mubr.bf16.mxu0 %v384
    %1790 = vmatmul.mubr.bf16.gmra.mxu0 %v383
    %v1791 = vpop.f32.mrf.mxu0
    %v1792 = vadd.f32 %v1751, %v1791
    %v1793 = vpop.f32.mrf.mxu0
    %v1794 = vadd.f32 %v1753, %v1793
    %v1795 = vpop.f32.mrf.mxu0
    %v1796 = vpop.f32.mrf.mxu0
    %1797 = vdwg.mxu0
    %1798 = vmatprep.subr.bf16.mxu0 %v1384
    %1799 = vmatpush1.bf16.msra.mxu0 %v1383
    %1800 = vmatprep.subr.bf16.mxu0 %v1380
    %1801 = vmatpush1.bf16.msra.mxu0 %v1379
    %1802 = vmatprep.subr.bf16.mxu0 %v1376
    %1803 = vmatpush1.bf16.msra.mxu0 %v1375
    %1804 = vmatprep.subr.bf16.mxu0 %v1372
    %1805 = vmatpush1.bf16.msra.mxu0 %v1371
    %1806 = vmatprep.subr.bf16.mxu0 %v1368
    %1807 = vmatpush1.bf16.msra.mxu0 %v1367
    %1808 = vmatprep.subr.bf16.mxu0 %v1364
    %1809 = vmatpush1.bf16.msra.mxu0 %v1363
    %1810 = vmatprep.subr.bf16.mxu0 %v1360
    %1811 = vmatpush1.bf16.msra.mxu0 %v1359
    %1812 = vmatprep.subr.bf16.mxu0 %v1356
    %1813 = vmatpush1.bf16.msra.mxu0 %v1355
    %1814 = vmatprep.subr.bf16.mxu0 %v1416
    %1815 = vmatpush2.bf16.msra.mxu0 %v1415
    %1816 = vmatprep.subr.bf16.mxu0 %v1412
    %1817 = vmatpush2.bf16.msra.mxu0 %v1411
    %1818 = vmatprep.subr.bf16.mxu0 %v1408
    %1819 = vmatpush2.bf16.msra.mxu0 %v1407
    %1820 = vmatprep.subr.bf16.mxu0 %v1404
    %1821 = vmatpush2.bf16.msra.mxu0 %v1403
    %1822 = vmatprep.subr.bf16.mxu0 %v1400
    %1823 = vmatpush2.bf16.msra.mxu0 %v1399
    %1824 = vmatprep.subr.bf16.mxu0 %v1396
    %1825 = vmatpush2.bf16.msra.mxu0 %v1395
    %1826 = vmatprep.subr.bf16.mxu0 %v1392
    %1827 = vmatpush2.bf16.msra.mxu0 %v1391
    %1828 = vmatprep.subr.bf16.mxu0 %v1388
    %1829 = vmatpush2.bf16.msra.mxu0 %v1387
    %1830 = vmatprep.mubr.bf16.mxu0 %v386
    %1831 = vmatmul.mubr.bf16.gmra.mxu0 %v385
    %v1832 = vpop.f32.mrf.mxu0
    %v1833 = vadd.f32 %v1792, %v1832
    %v1834 = vpop.f32.mrf.mxu0
    %v1835 = vadd.f32 %v1794, %v1834
    %v1836 = vpop.f32.mrf.mxu0
    %v1837 = vpop.f32.mrf.mxu0
    %1838 = vdwg.mxu0
    %1839 = vmatprep.subr.bf16.mxu0 %v1194
    %1840 = vmatpush1.bf16.msra.mxu0 %v1193
    %1841 = vmatprep.subr.bf16.mxu0 %v1190
    %1842 = vmatpush1.bf16.msra.mxu0 %v1189
    %1843 = vmatprep.subr.bf16.mxu0 %v1186
    %1844 = vmatpush1.bf16.msra.mxu0 %v1185
    %1845 = vmatprep.subr.bf16.mxu0 %v1182
    %1846 = vmatpush1.bf16.msra.mxu0 %v1181
    %1847 = vmatprep.subr.bf16.mxu0 %v1178
    %1848 = vmatpush1.bf16.msra.mxu0 %v1177
    %1849 = vmatprep.subr.bf16.mxu0 %v1174
    %1850 = vmatpush1.bf16.msra.mxu0 %v1173
    %1851 = vmatprep.subr.bf16.mxu0 %v1170
    %1852 = vmatpush1.bf16.msra.mxu0 %v1169
    %1853 = vmatprep.subr.bf16.mxu0 %v1166
    %1854 = vmatpush1.bf16.msra.mxu0 %v1165
    %1855 = vmatprep.subr.bf16.mxu0 %v1226
    %1856 = vmatpush2.bf16.msra.mxu0 %v1225
    %1857 = vmatprep.subr.bf16.mxu0 %v1222
    %1858 = vmatpush2.bf16.msra.mxu0 %v1221
    %1859 = vmatprep.subr.bf16.mxu0 %v1218
    %1860 = vmatpush2.bf16.msra.mxu0 %v1217
    %1861 = vmatprep.subr.bf16.mxu0 %v1214
    %1862 = vmatpush2.bf16.msra.mxu0 %v1213
    %1863 = vmatprep.subr.bf16.mxu0 %v1210
    %1864 = vmatpush2.bf16.msra.mxu0 %v1209
    %1865 = vmatprep.subr.bf16.mxu0 %v1206
    %1866 = vmatpush2.bf16.msra.mxu0 %v1205
    %1867 = vmatprep.subr.bf16.mxu0 %v1202
    %1868 = vmatpush2.bf16.msra.mxu0 %v1201
    %1869 = vmatprep.subr.bf16.mxu0 %v1198
    %1870 = vmatpush2.bf16.msra.mxu0 %v1197
    %1871 = vmatprep.mubr.bf16.mxu0 %v380
    %1872 = vmatmul.mubr.bf16.gmra.mxu0 %v379
    %v1873 = vpop.f32.mrf.mxu0
    %v1874 = vadd.f32 0.0, %v1873
    %v1875 = vpop.f32.mrf.mxu0
    %v1876 = vadd.f32 0.0, %v1875
    %v1877 = vpop.f32.mrf.mxu0
    %v1878 = vpop.f32.mrf.mxu0
    %1879 = vdwg.mxu0
    %1880 = vmatprep.subr.bf16.mxu0 %v1258
    %1881 = vmatpush1.bf16.msra.mxu0 %v1257
    %1882 = vmatprep.subr.bf16.mxu0 %v1254
    %1883 = vmatpush1.bf16.msra.mxu0 %v1253
    %1884 = vmatprep.subr.bf16.mxu0 %v1250
    %1885 = vmatpush1.bf16.msra.mxu0 %v1249
    %1886 = vmatprep.subr.bf16.mxu0 %v1246
    %1887 = vmatpush1.bf16.msra.mxu0 %v1245
    %1888 = vmatprep.subr.bf16.mxu0 %v1242
    %1889 = vmatpush1.bf16.msra.mxu0 %v1241
    %1890 = vmatprep.subr.bf16.mxu0 %v1238
    %1891 = vmatpush1.bf16.msra.mxu0 %v1237
    %1892 = vmatprep.subr.bf16.mxu0 %v1234
    %1893 = vmatpush1.bf16.msra.mxu0 %v1233
    %1894 = vmatprep.subr.bf16.mxu0 %v1230
    %1895 = vmatpush1.bf16.msra.mxu0 %v1229
    %1896 = vmatprep.subr.bf16.mxu0 %v1290
    %1897 = vmatpush2.bf16.msra.mxu0 %v1289
    %1898 = vmatprep.subr.bf16.mxu0 %v1286
    %1899 = vmatpush2.bf16.msra.mxu0 %v1285
    %1900 = vmatprep.subr.bf16.mxu0 %v1282
    %1901 = vmatpush2.bf16.msra.mxu0 %v1281
    %1902 = vmatprep.subr.bf16.mxu0 %v1278
    %1903 = vmatpush2.bf16.msra.mxu0 %v1277
    %1904 = vmatprep.subr.bf16.mxu0 %v1274
    %1905 = vmatpush2.bf16.msra.mxu0 %v1273
    %1906 = vmatprep.subr.bf16.mxu0 %v1270
    %1907 = vmatpush2.bf16.msra.mxu0 %v1269
    %1908 = vmatprep.subr.bf16.mxu0 %v1266
    %1909 = vmatpush2.bf16.msra.mxu0 %v1265
    %1910 = vmatprep.subr.bf16.mxu0 %v1262
    %1911 = vmatpush2.bf16.msra.mxu0 %v1261
    %1912 = vmatprep.mubr.bf16.mxu0 %v382
    %1913 = vmatmul.mubr.bf16.gmra.mxu0 %v381
    %v1914 = vpop.f32.mrf.mxu0
    %v1915 = vadd.f32 %v1874, %v1914
    %v1916 = vpop.f32.mrf.mxu0
    %v1917 = vadd.f32 %v1876, %v1916
    %v1918 = vpop.f32.mrf.mxu0
    %v1919 = vpop.f32.mrf.mxu0
    %1920 = vdwg.mxu0
    %1921 = vmatprep.subr.bf16.mxu0 %v1322
    %1922 = vmatpush1.bf16.msra.mxu0 %v1321
    %1923 = vmatprep.subr.bf16.mxu0 %v1318
    %1924 = vmatpush1.bf16.msra.mxu0 %v1317
    %1925 = vmatprep.subr.bf16.mxu0 %v1314
    %1926 = vmatpush1.bf16.msra.mxu0 %v1313
    %1927 = vmatprep.subr.bf16.mxu0 %v1310
    %1928 = vmatpush1.bf16.msra.mxu0 %v1309
    %1929 = vmatprep.subr.bf16.mxu0 %v1306
    %1930 = vmatpush1.bf16.msra.mxu0 %v1305
    %1931 = vmatprep.subr.bf16.mxu0 %v1302
    %1932 = vmatpush1.bf16.msra.mxu0 %v1301
    %1933 = vmatprep.subr.bf16.mxu0 %v1298
    %1934 = vmatpush1.bf16.msra.mxu0 %v1297
    %1935 = vmatprep.subr.bf16.mxu0 %v1294
    %1936 = vmatpush1.bf16.msra.mxu0 %v1293
    %1937 = vmatprep.subr.bf16.mxu0 %v1354
    %1938 = vmatpush2.bf16.msra.mxu0 %v1353
    %1939 = vmatprep.subr.bf16.mxu0 %v1350
    %1940 = vmatpush2.bf16.msra.mxu0 %v1349
    %1941 = vmatprep.subr.bf16.mxu0 %v1346
    %1942 = vmatpush2.bf16.msra.mxu0 %v1345
    %1943 = vmatprep.subr.bf16.mxu0 %v1342
    %1944 = vmatpush2.bf16.msra.mxu0 %v1341
    %1945 = vmatprep.subr.bf16.mxu0 %v1338
    %1946 = vmatpush2.bf16.msra.mxu0 %v1337
    %1947 = vmatprep.subr.bf16.mxu0 %v1334
    %1948 = vmatpush2.bf16.msra.mxu0 %v1333
    %1949 = vmatprep.subr.bf16.mxu0 %v1330
    %1950 = vmatpush2.bf16.msra.mxu0 %v1329
    %1951 = vmatprep.subr.bf16.mxu0 %v1326
    %1952 = vmatpush2.bf16.msra.mxu0 %v1325
    %1953 = vmatprep.mubr.bf16.mxu0 %v384
    %1954 = vmatmul.mubr.bf16.gmra.mxu0 %v383
    %v1955 = vpop.f32.mrf.mxu0
    %v1956 = vadd.f32 %v1915, %v1955
    %v1957 = vpop.f32.mrf.mxu0
    %v1958 = vadd.f32 %v1917, %v1957
    %v1959 = vpop.f32.mrf.mxu0
    %v1960 = vpop.f32.mrf.mxu0
    %1961 = vdwg.mxu0
    %1962 = vmatprep.subr.bf16.mxu0 %v1386
    %1963 = vmatpush1.bf16.msra.mxu0 %v1385
    %1964 = vmatprep.subr.bf16.mxu0 %v1382
    %1965 = vmatpush1.bf16.msra.mxu0 %v1381
    %1966 = vmatprep.subr.bf16.mxu0 %v1378
    %1967 = vmatpush1.bf16.msra.mxu0 %v1377
    %1968 = vmatprep.subr.bf16.mxu0 %v1374
    %1969 = vmatpush1.bf16.msra.mxu0 %v1373
    %1970 = vmatprep.subr.bf16.mxu0 %v1370
    %1971 = vmatpush1.bf16.msra.mxu0 %v1369
    %1972 = vmatprep.subr.bf16.mxu0 %v1366
    %1973 = vmatpush1.bf16.msra.mxu0 %v1365
    %1974 = vmatprep.subr.bf16.mxu0 %v1362
    %1975 = vmatpush1.bf16.msra.mxu0 %v1361
    %1976 = vmatprep.subr.bf16.mxu0 %v1358
    %1977 = vmatpush1.bf16.msra.mxu0 %v1357
    %1978 = vmatprep.subr.bf16.mxu0 %v1418
    %1979 = vmatpush2.bf16.msra.mxu0 %v1417
    %1980 = vmatprep.subr.bf16.mxu0 %v1414
    %1981 = vmatpush2.bf16.msra.mxu0 %v1413
    %1982 = vmatprep.subr.bf16.mxu0 %v1410
    %1983 = vmatpush2.bf16.msra.mxu0 %v1409
    %1984 = vmatprep.subr.bf16.mxu0 %v1406
    %1985 = vmatpush2.bf16.msra.mxu0 %v1405
    %1986 = vmatprep.subr.bf16.mxu0 %v1402
    %1987 = vmatpush2.bf16.msra.mxu0 %v1401
    %1988 = vmatprep.subr.bf16.mxu0 %v1398
    %1989 = vmatpush2.bf16.msra.mxu0 %v1397
    %1990 = vmatprep.subr.bf16.mxu0 %v1394
    %1991 = vmatpush2.bf16.msra.mxu0 %v1393
    %1992 = vmatprep.subr.bf16.mxu0 %v1390
    %1993 = vmatpush2.bf16.msra.mxu0 %v1389
    %1994 = vmatprep.mubr.bf16.mxu0 %v386
    %1995 = vmatmul.mubr.bf16.gmra.mxu0 %v385
    %v1996 = vpop.f32.mrf.mxu0
    %v1997 = vadd.f32 %v1956, %v1996
    %v1998 = vpop.f32.mrf.mxu0
    %v1999 = vadd.f32 %v1958, %v1998
    %v2000 = vpop.f32.mrf.mxu0
    %v2001 = vpop.f32.mrf.mxu0
    %2002 = vdwg.mxu0
    %v2003 = vadd.f32 %v103, %v1833
    %v2004 = vadd.f32 %v104, %v1835
    %v2005 = vadd.f32 %v105, %v1997
    %v2006 = vadd.f32 %v106, %v1999
    %2007 = vst [vmem:[#allocation2] sm:$0xff] %v2003
    %2008 = vst [vmem:[#allocation2 + $0x8] sm:$0xff] %v2004
    %2009 = vst [vmem:[#allocation2 + $0x10] sm:$0xff] %v2005
    %2010 = vst [vmem:[#allocation2 + $0x18] sm:$0xff] %v2006
    // Predicated region
    $region54: #{tpu_custom_call.1} parent=1 // pred_check
      %p2011 = pneg %p95
    $region55: #{tpu_custom_call.1} parent=1 // pred_check_branch
      %2013 = sbr.rel (%p2011) target = $region57
    $region56: #{tpu_custom_call.1} parent=1 // pred_region
      %v2014 = vld [vmem:[#allocation2] sm:$0xff]
      %v2015 = vld [vmem:[#allocation2 + $0x8] sm:$0xff]
      %v2016 = vld [vmem:[#allocation2 + $0x10] sm:$0xff]
      %v2017 = vld [vmem:[#allocation2 + $0x18] sm:$0xff]
      %v2018 = vld [vmem:[#allocation8] sm:$0xf]
      %v2020 = vlaneseq
      %v2021 = vshrl.u32 %v2020, 7
      %v2022 = vsub.s32 0, %v2021
      %v2023 = vrot.slane %v2018, %v2022
      %v2024 = vlaneseq
      %v2025 = vshrl.u32 %v2024, 7
      %v2026 = vsub.s32 1, %v2025
      %v2027 = vrot.slane %v2018, %v2026
      %v2028 = vlaneseq
      %v2029 = vshrl.u32 %v2028, 7
      %v2030 = vsub.s32 2, %v2029
      %v2031 = vrot.slane %v2018, %v2030
      %v2032 = vlaneseq
      %v2033 = vshrl.u32 %v2032, 7
      %v2034 = vsub.s32 3, %v2033
      %v2035 = vrot.slane %v2018, %v2034
      %v2040 = vadd.f32 %v2014, %v2023
      %v2041 = vadd.f32 %v2015, %v2027
      %v2042 = vadd.f32 %v2016, %v2031
      %v2043 = vadd.f32 %v2017, %v2035
      %v2044 = vpack.c.bf16 %v2040, %v2040
      %v2045 = vpack.c.bf16 %v2041, %v2041
      %v2046 = vpack.c.bf16 %v2042, %v2042
      %v2047 = vpack.c.bf16 %v2043, %v2043
      %v2052 = vunpack.c.l.b16 %v2044
      %v2053 = vunpack.c.l.b16 %v2045
      %v2054 = vunpack.c.l.b16 %v2046
      %v2055 = vunpack.c.l.b16 %v2047
      %v2056 = vpack.c.b16 %v2053, %v2052
      %v2057 = vpack.c.b16 %v2055, %v2054
      %2060 = vst [vmem:[#allocation13] sm:$0xff] %v2056
      %2061 = vst [vmem:[#allocation13 + $0x8] sm:$0xff] %v2057
      %v2062 = vld [vmem:[#allocation9] sm:$0xff]
      %v2063 = vld [vmem:[#allocation9 + $0x8] sm:$0xff]
      %v2064 = vld [vmem:[#allocation9 + $0x10] sm:$0xff]
      %v2065 = vld [vmem:[#allocation9 + $0x18] sm:$0xff]
      %v2066 = vld [vmem:[#allocation9 + $0x20] sm:$0xff]
      %v2067 = vld [vmem:[#allocation9 + $0x28] sm:$0xff]
      %v2068 = vld [vmem:[#allocation9 + $0x30] sm:$0xff]
      %v2069 = vld [vmem:[#allocation9 + $0x38] sm:$0xff]
      %v2070 = vld [vmem:[#allocation9 + $0x40] sm:$0xff]
      %v2071 = vld [vmem:[#allocation9 + $0x48] sm:$0xff]
      %v2072 = vld [vmem:[#allocation9 + $0x50] sm:$0xff]
      %v2073 = vld [vmem:[#allocation9 + $0x58] sm:$0xff]
      %v2074 = vld [vmem:[#allocation9 + $0x60] sm:$0xff]
      %v2075 = vld [vmem:[#allocation9 + $0x68] sm:$0xff]
      %v2076 = vld [vmem:[#allocation9 + $0x70] sm:$0xff]
      %v2077 = vld [vmem:[#allocation9 + $0x78] sm:$0xff]
      %v2078 = vld [vmem:[#allocation9 + $0x80] sm:$0xff]
      %v2079 = vld [vmem:[#allocation9 + $0x88] sm:$0xff]
      %v2080 = vld [vmem:[#allocation9 + $0x90] sm:$0xff]
      %v2081 = vld [vmem:[#allocation9 + $0x98] sm:$0xff]
      %v2082 = vld [vmem:[#allocation9 + $0xa0] sm:$0xff]
      %v2083 = vld [vmem:[#allocation9 + $0xa8] sm:$0xff]
      %v2084 = vld [vmem:[#allocation9 + $0xb0] sm:$0xff]
      %v2085 = vld [vmem:[#allocation9 + $0xb8] sm:$0xff]
      %v2086 = vld [vmem:[#allocation9 + $0xc0] sm:$0xff]
      %v2087 = vld [vmem:[#allocation9 + $0xc8] sm:$0xff]
      %v2088 = vld [vmem:[#allocation9 + $0xd0] sm:$0xff]
      %v2089 = vld [vmem:[#allocation9 + $0xd8] sm:$0xff]
      %v2090 = vld [vmem:[#allocation9 + $0xe0] sm:$0xff]
      %v2091 = vld [vmem:[#allocation9 + $0xe8] sm:$0xff]
      %v2092 = vld [vmem:[#allocation9 + $0xf0] sm:$0xff]
      %v2093 = vld [vmem:[#allocation9 + $0xf8] sm:$0xff]
      %v2094 = vld [vmem:[#allocation9 + $0x100] sm:$0xff]
      %v2095 = vld [vmem:[#allocation9 + $0x108] sm:$0xff]
      %v2096 = vld [vmem:[#allocation9 + $0x110] sm:$0xff]
      %v2097 = vld [vmem:[#allocation9 + $0x118] sm:$0xff]
      %v2098 = vld [vmem:[#allocation9 + $0x120] sm:$0xff]
      %v2099 = vld [vmem:[#allocation9 + $0x128] sm:$0xff]
      %v2100 = vld [vmem:[#allocation9 + $0x130] sm:$0xff]
      %v2101 = vld [vmem:[#allocation9 + $0x138] sm:$0xff]
      %v2102 = vld [vmem:[#allocation9 + $0x140] sm:$0xff]
      %v2103 = vld [vmem:[#allocation9 + $0x148] sm:$0xff]
      %v2104 = vld [vmem:[#allocation9 + $0x150] sm:$0xff]
      %v2105 = vld [vmem:[#allocation9 + $0x158] sm:$0xff]
      %v2106 = vld [vmem:[#allocation9 + $0x160] sm:$0xff]
      %v2107 = vld [vmem:[#allocation9 + $0x168] sm:$0xff]
      %v2108 = vld [vmem:[#allocation9 + $0x170] sm:$0xff]
      %v2109 = vld [vmem:[#allocation9 + $0x178] sm:$0xff]
      %v2110 = vld [vmem:[#allocation9 + $0x180] sm:$0xff]
      %v2111 = vld [vmem:[#allocation9 + $0x188] sm:$0xff]
      %v2112 = vld [vmem:[#allocation9 + $0x190] sm:$0xff]
      %v2113 = vld [vmem:[#allocation9 + $0x198] sm:$0xff]
      %v2114 = vld [vmem:[#allocation9 + $0x1a0] sm:$0xff]
      %v2115 = vld [vmem:[#allocation9 + $0x1a8] sm:$0xff]
      %v2116 = vld [vmem:[#allocation9 + $0x1b0] sm:$0xff]
      %v2117 = vld [vmem:[#allocation9 + $0x1b8] sm:$0xff]
      %v2118 = vld [vmem:[#allocation9 + $0x1c0] sm:$0xff]
      %v2119 = vld [vmem:[#allocation9 + $0x1c8] sm:$0xff]
      %v2120 = vld [vmem:[#allocation9 + $0x1d0] sm:$0xff]
      %v2121 = vld [vmem:[#allocation9 + $0x1d8] sm:$0xff]
      %v2122 = vld [vmem:[#allocation9 + $0x1e0] sm:$0xff]
      %v2123 = vld [vmem:[#allocation9 + $0x1e8] sm:$0xff]
      %v2124 = vld [vmem:[#allocation9 + $0x1f0] sm:$0xff]
      %v2125 = vld [vmem:[#allocation9 + $0x1f8] sm:$0xff]
      %v2126 = vld [vmem:[#allocation9 + $0x200] sm:$0xff]
      %v2127 = vld [vmem:[#allocation9 + $0x208] sm:$0xff]
      %v2128 = vld [vmem:[#allocation9 + $0x210] sm:$0xff]
      %v2129 = vld [vmem:[#allocation9 + $0x218] sm:$0xff]
      %v2130 = vld [vmem:[#allocation9 + $0x220] sm:$0xff]
      %v2131 = vld [vmem:[#allocation9 + $0x228] sm:$0xff]
      %v2132 = vld [vmem:[#allocation9 + $0x230] sm:$0xff]
      %v2133 = vld [vmem:[#allocation9 + $0x238] sm:$0xff]
      %v2134 = vld [vmem:[#allocation9 + $0x240] sm:$0xff]
      %v2135 = vld [vmem:[#allocation9 + $0x248] sm:$0xff]
      %v2136 = vld [vmem:[#allocation9 + $0x250] sm:$0xff]
      %v2137 = vld [vmem:[#allocation9 + $0x258] sm:$0xff]
      %v2138 = vld [vmem:[#allocation9 + $0x260] sm:$0xff]
      %v2139 = vld [vmem:[#allocation9 + $0x268] sm:$0xff]
      %v2140 = vld [vmem:[#allocation9 + $0x270] sm:$0xff]
      %v2141 = vld [vmem:[#allocation9 + $0x278] sm:$0xff]
      %v2142 = vld [vmem:[#allocation9 + $0x280] sm:$0xff]
      %v2143 = vld [vmem:[#allocation9 + $0x288] sm:$0xff]
      %v2144 = vld [vmem:[#allocation9 + $0x290] sm:$0xff]
      %v2145 = vld [vmem:[#allocation9 + $0x298] sm:$0xff]
      %v2146 = vld [vmem:[#allocation9 + $0x2a0] sm:$0xff]
      %v2147 = vld [vmem:[#allocation9 + $0x2a8] sm:$0xff]
      %v2148 = vld [vmem:[#allocation9 + $0x2b0] sm:$0xff]
      %v2149 = vld [vmem:[#allocation9 + $0x2b8] sm:$0xff]
      %v2150 = vld [vmem:[#allocation9 + $0x2c0] sm:$0xff]
      %v2151 = vld [vmem:[#allocation9 + $0x2c8] sm:$0xff]
      %v2152 = vld [vmem:[#allocation9 + $0x2d0] sm:$0xff]
      %v2153 = vld [vmem:[#allocation9 + $0x2d8] sm:$0xff]
      %v2154 = vld [vmem:[#allocation9 + $0x2e0] sm:$0xff]
      %v2155 = vld [vmem:[#allocation9 + $0x2e8] sm:$0xff]
      %v2156 = vld [vmem:[#allocation9 + $0x2f0] sm:$0xff]
      %v2157 = vld [vmem:[#allocation9 + $0x2f8] sm:$0xff]
      %v2158 = vld [vmem:[#allocation9 + $0x300] sm:$0xff]
      %v2159 = vld [vmem:[#allocation9 + $0x308] sm:$0xff]
      %v2160 = vld [vmem:[#allocation9 + $0x310] sm:$0xff]
      %v2161 = vld [vmem:[#allocation9 + $0x318] sm:$0xff]
      %v2162 = vld [vmem:[#allocation9 + $0x320] sm:$0xff]
      %v2163 = vld [vmem:[#allocation9 + $0x328] sm:$0xff]
      %v2164 = vld [vmem:[#allocation9 + $0x330] sm:$0xff]
      %v2165 = vld [vmem:[#allocation9 + $0x338] sm:$0xff]
      %v2166 = vld [vmem:[#allocation9 + $0x340] sm:$0xff]
      %v2167 = vld [vmem:[#allocation9 + $0x348] sm:$0xff]
      %v2168 = vld [vmem:[#allocation9 + $0x350] sm:$0xff]
      %v2169 = vld [vmem:[#allocation9 + $0x358] sm:$0xff]
      %v2170 = vld [vmem:[#allocation9 + $0x360] sm:$0xff]
      %v2171 = vld [vmem:[#allocation9 + $0x368] sm:$0xff]
      %v2172 = vld [vmem:[#allocation9 + $0x370] sm:$0xff]
      %v2173 = vld [vmem:[#allocation9 + $0x378] sm:$0xff]
      %v2174 = vld [vmem:[#allocation9 + $0x380] sm:$0xff]
      %v2175 = vld [vmem:[#allocation9 + $0x388] sm:$0xff]
      %v2176 = vld [vmem:[#allocation9 + $0x390] sm:$0xff]
      %v2177 = vld [vmem:[#allocation9 + $0x398] sm:$0xff]
      %v2178 = vld [vmem:[#allocation9 + $0x3a0] sm:$0xff]
      %v2179 = vld [vmem:[#allocation9 + $0x3a8] sm:$0xff]
      %v2180 = vld [vmem:[#allocation9 + $0x3b0] sm:$0xff]
      %v2181 = vld [vmem:[#allocation9 + $0x3b8] sm:$0xff]
      %v2182 = vld [vmem:[#allocation9 + $0x3c0] sm:$0xff]
      %v2183 = vld [vmem:[#allocation9 + $0x3c8] sm:$0xff]
      %v2184 = vld [vmem:[#allocation9 + $0x3d0] sm:$0xff]
      %v2185 = vld [vmem:[#allocation9 + $0x3d8] sm:$0xff]
      %v2186 = vld [vmem:[#allocation9 + $0x3e0] sm:$0xff]
      %v2187 = vld [vmem:[#allocation9 + $0x3e8] sm:$0xff]
      %v2188 = vld [vmem:[#allocation9 + $0x3f0] sm:$0xff]
      %v2189 = vld [vmem:[#allocation9 + $0x3f8] sm:$0xff]
      %v2190 = vld [vmem:[%s4] sm:$0xf]
      %v2192 = vlaneseq
      %v2193 = vshrl.u32 %v2192, 7
      %v2194 = vsub.s32 0, %v2193
      %v2195 = vrot.slane %v2190, %v2194
      %v2196 = vlaneseq
      %v2197 = vshrl.u32 %v2196, 7
      %v2198 = vsub.s32 1, %v2197
      %v2199 = vrot.slane %v2190, %v2198
      %v2200 = vlaneseq
      %v2201 = vshrl.u32 %v2200, 7
      %v2202 = vsub.s32 2, %v2201
      %v2203 = vrot.slane %v2190, %v2202
      %v2204 = vlaneseq
      %v2205 = vshrl.u32 %v2204, 7
      %v2206 = vsub.s32 3, %v2205
      %v2207 = vrot.slane %v2190, %v2206
      %v2340 = vunpack.c.l.b16 %v2062
      %v2341 = vunpack.c.h.b16 %v2062
      %v2342 = vunpack.c.l.b16 %v2063
      %v2343 = vunpack.c.h.b16 %v2063
      %v2344 = vunpack.c.l.b16 %v2064
      %v2345 = vunpack.c.h.b16 %v2064
      %v2346 = vunpack.c.l.b16 %v2065
      %v2347 = vunpack.c.h.b16 %v2065
      %v2348 = vunpack.c.l.b16 %v2066
      %v2349 = vunpack.c.h.b16 %v2066
      %v2350 = vunpack.c.l.b16 %v2067
      %v2351 = vunpack.c.h.b16 %v2067
      %v2352 = vunpack.c.l.b16 %v2068
      %v2353 = vunpack.c.h.b16 %v2068
      %v2354 = vunpack.c.l.b16 %v2069
      %v2355 = vunpack.c.h.b16 %v2069
      %v2356 = vunpack.c.l.b16 %v2070
      %v2357 = vunpack.c.h.b16 %v2070
      %v2358 = vunpack.c.l.b16 %v2071
      %v2359 = vunpack.c.h.b16 %v2071
      %v2360 = vunpack.c.l.b16 %v2072
      %v2361 = vunpack.c.h.b16 %v2072
      %v2362 = vunpack.c.l.b16 %v2073
      %v2363 = vunpack.c.h.b16 %v2073
      %v2364 = vunpack.c.l.b16 %v2074
      %v2365 = vunpack.c.h.b16 %v2074
      %v2366 = vunpack.c.l.b16 %v2075
      %v2367 = vunpack.c.h.b16 %v2075
      %v2368 = vunpack.c.l.b16 %v2076
      %v2369 = vunpack.c.h.b16 %v2076
      %v2370 = vunpack.c.l.b16 %v2077
      %v2371 = vunpack.c.h.b16 %v2077
      %v2372 = vunpack.c.l.b16 %v2078
      %v2373 = vunpack.c.h.b16 %v2078
      %v2374 = vunpack.c.l.b16 %v2079
      %v2375 = vunpack.c.h.b16 %v2079
      %v2376 = vunpack.c.l.b16 %v2080
      %v2377 = vunpack.c.h.b16 %v2080
      %v2378 = vunpack.c.l.b16 %v2081
      %v2379 = vunpack.c.h.b16 %v2081
      %v2380 = vunpack.c.l.b16 %v2082
      %v2381 = vunpack.c.h.b16 %v2082
      %v2382 = vunpack.c.l.b16 %v2083
      %v2383 = vunpack.c.h.b16 %v2083
      %v2384 = vunpack.c.l.b16 %v2084
      %v2385 = vunpack.c.h.b16 %v2084
      %v2386 = vunpack.c.l.b16 %v2085
      %v2387 = vunpack.c.h.b16 %v2085
      %v2388 = vunpack.c.l.b16 %v2086
      %v2389 = vunpack.c.h.b16 %v2086
      %v2390 = vunpack.c.l.b16 %v2087
      %v2391 = vunpack.c.h.b16 %v2087
      %v2392 = vunpack.c.l.b16 %v2088
      %v2393 = vunpack.c.h.b16 %v2088
      %v2394 = vunpack.c.l.b16 %v2089
      %v2395 = vunpack.c.h.b16 %v2089
      %v2396 = vunpack.c.l.b16 %v2090
      %v2397 = vunpack.c.h.b16 %v2090
      %v2398 = vunpack.c.l.b16 %v2091
      %v2399 = vunpack.c.h.b16 %v2091
      %v2400 = vunpack.c.l.b16 %v2092
      %v2401 = vunpack.c.h.b16 %v2092
      %v2402 = vunpack.c.l.b16 %v2093
      %v2403 = vunpack.c.h.b16 %v2093
      %v2404 = vunpack.c.l.b16 %v2094
      %v2405 = vunpack.c.h.b16 %v2094
      %v2406 = vunpack.c.l.b16 %v2095
      %v2407 = vunpack.c.h.b16 %v2095
      %v2408 = vunpack.c.l.b16 %v2096
      %v2409 = vunpack.c.h.b16 %v2096
      %v2410 = vunpack.c.l.b16 %v2097
      %v2411 = vunpack.c.h.b16 %v2097
      %v2412 = vunpack.c.l.b16 %v2098
      %v2413 = vunpack.c.h.b16 %v2098
      %v2414 = vunpack.c.l.b16 %v2099
      %v2415 = vunpack.c.h.b16 %v2099
      %v2416 = vunpack.c.l.b16 %v2100
      %v2417 = vunpack.c.h.b16 %v2100
      %v2418 = vunpack.c.l.b16 %v2101
      %v2419 = vunpack.c.h.b16 %v2101
      %v2420 = vunpack.c.l.b16 %v2102
      %v2421 = vunpack.c.h.b16 %v2102
      %v2422 = vunpack.c.l.b16 %v2103
      %v2423 = vunpack.c.h.b16 %v2103
      %v2424 = vunpack.c.l.b16 %v2104
      %v2425 = vunpack.c.h.b16 %v2104
      %v2426 = vunpack.c.l.b16 %v2105
      %v2427 = vunpack.c.h.b16 %v2105
      %v2428 = vunpack.c.l.b16 %v2106
      %v2429 = vunpack.c.h.b16 %v2106
      %v2430 = vunpack.c.l.b16 %v2107
      %v2431 = vunpack.c.h.b16 %v2107
      %v2432 = vunpack.c.l.b16 %v2108
      %v2433 = vunpack.c.h.b16 %v2108
      %v2434 = vunpack.c.l.b16 %v2109
      %v2435 = vunpack.c.h.b16 %v2109
      %v2436 = vunpack.c.l.b16 %v2110
      %v2437 = vunpack.c.h.b16 %v2110
      %v2438 = vunpack.c.l.b16 %v2111
      %v2439 = vunpack.c.h.b16 %v2111
      %v2440 = vunpack.c.l.b16 %v2112
      %v2441 = vunpack.c.h.b16 %v2112
      %v2442 = vunpack.c.l.b16 %v2113
      %v2443 = vunpack.c.h.b16 %v2113
      %v2444 = vunpack.c.l.b16 %v2114
      %v2445 = vunpack.c.h.b16 %v2114
      %v2446 = vunpack.c.l.b16 %v2115
      %v2447 = vunpack.c.h.b16 %v2115
      %v2448 = vunpack.c.l.b16 %v2116
      %v2449 = vunpack.c.h.b16 %v2116
      %v2450 = vunpack.c.l.b16 %v2117
      %v2451 = vunpack.c.h.b16 %v2117
      %v2452 = vunpack.c.l.b16 %v2118
      %v2453 = vunpack.c.h.b16 %v2118
      %v2454 = vunpack.c.l.b16 %v2119
      %v2455 = vunpack.c.h.b16 %v2119
      %v2456 = vunpack.c.l.b16 %v2120
      %v2457 = vunpack.c.h.b16 %v2120
      %v2458 = vunpack.c.l.b16 %v2121
      %v2459 = vunpack.c.h.b16 %v2121
      %v2460 = vunpack.c.l.b16 %v2122
      %v2461 = vunpack.c.h.b16 %v2122
      %v2462 = vunpack.c.l.b16 %v2123
      %v2463 = vunpack.c.h.b16 %v2123
      %v2464 = vunpack.c.l.b16 %v2124
      %v2465 = vunpack.c.h.b16 %v2124
      %v2466 = vunpack.c.l.b16 %v2125
      %v2467 = vunpack.c.h.b16 %v2125
      %v2468 = vunpack.c.l.b16 %v2126
      %v2469 = vunpack.c.h.b16 %v2126
      %v2470 = vunpack.c.l.b16 %v2127
      %v2471 = vunpack.c.h.b16 %v2127
      %v2472 = vunpack.c.l.b16 %v2128
      %v2473 = vunpack.c.h.b16 %v2128
      %v2474 = vunpack.c.l.b16 %v2129
      %v2475 = vunpack.c.h.b16 %v2129
      %v2476 = vunpack.c.l.b16 %v2130
      %v2477 = vunpack.c.h.b16 %v2130
      %v2478 = vunpack.c.l.b16 %v2131
      %v2479 = vunpack.c.h.b16 %v2131
      %v2480 = vunpack.c.l.b16 %v2132
      %v2481 = vunpack.c.h.b16 %v2132
      %v2482 = vunpack.c.l.b16 %v2133
      %v2483 = vunpack.c.h.b16 %v2133
      %v2484 = vunpack.c.l.b16 %v2134
      %v2485 = vunpack.c.h.b16 %v2134
      %v2486 = vunpack.c.l.b16 %v2135
      %v2487 = vunpack.c.h.b16 %v2135
      %v2488 = vunpack.c.l.b16 %v2136
      %v2489 = vunpack.c.h.b16 %v2136
      %v2490 = vunpack.c.l.b16 %v2137
      %v2491 = vunpack.c.h.b16 %v2137
      %v2492 = vunpack.c.l.b16 %v2138
      %v2493 = vunpack.c.h.b16 %v2138
      %v2494 = vunpack.c.l.b16 %v2139
      %v2495 = vunpack.c.h.b16 %v2139
      %v2496 = vunpack.c.l.b16 %v2140
      %v2497 = vunpack.c.h.b16 %v2140
      %v2498 = vunpack.c.l.b16 %v2141
      %v2499 = vunpack.c.h.b16 %v2141
      %v2500 = vunpack.c.l.b16 %v2142
      %v2501 = vunpack.c.h.b16 %v2142
      %v2502 = vunpack.c.l.b16 %v2143
      %v2503 = vunpack.c.h.b16 %v2143
      %v2504 = vunpack.c.l.b16 %v2144
      %v2505 = vunpack.c.h.b16 %v2144
      %v2506 = vunpack.c.l.b16 %v2145
      %v2507 = vunpack.c.h.b16 %v2145
      %v2508 = vunpack.c.l.b16 %v2146
      %v2509 = vunpack.c.h.b16 %v2146
      %v2510 = vunpack.c.l.b16 %v2147
      %v2511 = vunpack.c.h.b16 %v2147
      %v2512 = vunpack.c.l.b16 %v2148
      %v2513 = vunpack.c.h.b16 %v2148
      %v2514 = vunpack.c.l.b16 %v2149
      %v2515 = vunpack.c.h.b16 %v2149
      %v2516 = vunpack.c.l.b16 %v2150
      %v2517 = vunpack.c.h.b16 %v2150
      %v2518 = vunpack.c.l.b16 %v2151
      %v2519 = vunpack.c.h.b16 %v2151
      %v2520 = vunpack.c.l.b16 %v2152
      %v2521 = vunpack.c.h.b16 %v2152
      %v2522 = vunpack.c.l.b16 %v2153
      %v2523 = vunpack.c.h.b16 %v2153
      %v2524 = vunpack.c.l.b16 %v2154
      %v2525 = vunpack.c.h.b16 %v2154
      %v2526 = vunpack.c.l.b16 %v2155
      %v2527 = vunpack.c.h.b16 %v2155
      %v2528 = vunpack.c.l.b16 %v2156
      %v2529 = vunpack.c.h.b16 %v2156
      %v2530 = vunpack.c.l.b16 %v2157
      %v2531 = vunpack.c.h.b16 %v2157
      %v2532 = vunpack.c.l.b16 %v2158
      %v2533 = vunpack.c.h.b16 %v2158
      %v2534 = vunpack.c.l.b16 %v2159
      %v2535 = vunpack.c.h.b16 %v2159
      %v2536 = vunpack.c.l.b16 %v2160
      %v2537 = vunpack.c.h.b16 %v2160
      %v2538 = vunpack.c.l.b16 %v2161
      %v2539 = vunpack.c.h.b16 %v2161
      %v2540 = vunpack.c.l.b16 %v2162
      %v2541 = vunpack.c.h.b16 %v2162
      %v2542 = vunpack.c.l.b16 %v2163
      %v2543 = vunpack.c.h.b16 %v2163
      %v2544 = vunpack.c.l.b16 %v2164
      %v2545 = vunpack.c.h.b16 %v2164
      %v2546 = vunpack.c.l.b16 %v2165
      %v2547 = vunpack.c.h.b16 %v2165
      %v2548 = vunpack.c.l.b16 %v2166
      %v2549 = vunpack.c.h.b16 %v2166
      %v2550 = vunpack.c.l.b16 %v2167
      %v2551 = vunpack.c.h.b16 %v2167
      %v2552 = vunpack.c.l.b16 %v2168
      %v2553 = vunpack.c.h.b16 %v2168
      %v2554 = vunpack.c.l.b16 %v2169
      %v2555 = vunpack.c.h.b16 %v2169
      %v2556 = vunpack.c.l.b16 %v2170
      %v2557 = vunpack.c.h.b16 %v2170
      %v2558 = vunpack.c.l.b16 %v2171
      %v2559 = vunpack.c.h.b16 %v2171
      %v2560 = vunpack.c.l.b16 %v2172
      %v2561 = vunpack.c.h.b16 %v2172
      %v2562 = vunpack.c.l.b16 %v2173
      %v2563 = vunpack.c.h.b16 %v2173
      %v2564 = vunpack.c.l.b16 %v2174
      %v2565 = vunpack.c.h.b16 %v2174
      %v2566 = vunpack.c.l.b16 %v2175
      %v2567 = vunpack.c.h.b16 %v2175
      %v2568 = vunpack.c.l.b16 %v2176
      %v2569 = vunpack.c.h.b16 %v2176
      %v2570 = vunpack.c.l.b16 %v2177
      %v2571 = vunpack.c.h.b16 %v2177
      %v2572 = vunpack.c.l.b16 %v2178
      %v2573 = vunpack.c.h.b16 %v2178
      %v2574 = vunpack.c.l.b16 %v2179
      %v2575 = vunpack.c.h.b16 %v2179
      %v2576 = vunpack.c.l.b16 %v2180
      %v2577 = vunpack.c.h.b16 %v2180
      %v2578 = vunpack.c.l.b16 %v2181
      %v2579 = vunpack.c.h.b16 %v2181
      %v2580 = vunpack.c.l.b16 %v2182
      %v2581 = vunpack.c.h.b16 %v2182
      %v2582 = vunpack.c.l.b16 %v2183
      %v2583 = vunpack.c.h.b16 %v2183
      %v2584 = vunpack.c.l.b16 %v2184
      %v2585 = vunpack.c.h.b16 %v2184
      %v2586 = vunpack.c.l.b16 %v2185
      %v2587 = vunpack.c.h.b16 %v2185
      %v2588 = vunpack.c.l.b16 %v2186
      %v2589 = vunpack.c.h.b16 %v2186
      %v2590 = vunpack.c.l.b16 %v2187
      %v2591 = vunpack.c.h.b16 %v2187
      %v2592 = vunpack.c.l.b16 %v2188
      %v2593 = vunpack.c.h.b16 %v2188
      %v2594 = vunpack.c.l.b16 %v2189
      %v2595 = vunpack.c.h.b16 %v2189
      %v2596 = vpack.c.b16 %v2344, %v2340
      %v2597 = vpack.c.b16 %v2345, %v2341
      %v2598 = vpack.c.b16 %v2346, %v2342
      %v2599 = vpack.c.b16 %v2347, %v2343
      %v2600 = vpack.c.b16 %v2352, %v2348
      %v2601 = vpack.c.b16 %v2353, %v2349
      %v2602 = vpack.c.b16 %v2354, %v2350
      %v2603 = vpack.c.b16 %v2355, %v2351
      %v2604 = vpack.c.b16 %v2360, %v2356
      %v2605 = vpack.c.b16 %v2361, %v2357
      %v2606 = vpack.c.b16 %v2362, %v2358
      %v2607 = vpack.c.b16 %v2363, %v2359
      %v2608 = vpack.c.b16 %v2368, %v2364
      %v2609 = vpack.c.b16 %v2369, %v2365
      %v2610 = vpack.c.b16 %v2370, %v2366
      %v2611 = vpack.c.b16 %v2371, %v2367
      %v2612 = vpack.c.b16 %v2376, %v2372
      %v2613 = vpack.c.b16 %v2377, %v2373
      %v2614 = vpack.c.b16 %v2378, %v2374
      %v2615 = vpack.c.b16 %v2379, %v2375
      %v2616 = vpack.c.b16 %v2384, %v2380
      %v2617 = vpack.c.b16 %v2385, %v2381
      %v2618 = vpack.c.b16 %v2386, %v2382
      %v2619 = vpack.c.b16 %v2387, %v2383
      %v2620 = vpack.c.b16 %v2392, %v2388
      %v2621 = vpack.c.b16 %v2393, %v2389
      %v2622 = vpack.c.b16 %v2394, %v2390
      %v2623 = vpack.c.b16 %v2395, %v2391
      %v2624 = vpack.c.b16 %v2400, %v2396
      %v2625 = vpack.c.b16 %v2401, %v2397
      %v2626 = vpack.c.b16 %v2402, %v2398
      %v2627 = vpack.c.b16 %v2403, %v2399
      %v2628 = vpack.c.b16 %v2408, %v2404
      %v2629 = vpack.c.b16 %v2409, %v2405
      %v2630 = vpack.c.b16 %v2410, %v2406
      %v2631 = vpack.c.b16 %v2411, %v2407
      %v2632 = vpack.c.b16 %v2416, %v2412
      %v2633 = vpack.c.b16 %v2417, %v2413
      %v2634 = vpack.c.b16 %v2418, %v2414
      %v2635 = vpack.c.b16 %v2419, %v2415
      %v2636 = vpack.c.b16 %v2424, %v2420
      %v2637 = vpack.c.b16 %v2425, %v2421
      %v2638 = vpack.c.b16 %v2426, %v2422
      %v2639 = vpack.c.b16 %v2427, %v2423
      %v2640 = vpack.c.b16 %v2432, %v2428
      %v2641 = vpack.c.b16 %v2433, %v2429
      %v2642 = vpack.c.b16 %v2434, %v2430
      %v2643 = vpack.c.b16 %v2435, %v2431
      %v2644 = vpack.c.b16 %v2440, %v2436
      %v2645 = vpack.c.b16 %v2441, %v2437
      %v2646 = vpack.c.b16 %v2442, %v2438
      %v2647 = vpack.c.b16 %v2443, %v2439
      %v2648 = vpack.c.b16 %v2448, %v2444
      %v2649 = vpack.c.b16 %v2449, %v2445
      %v2650 = vpack.c.b16 %v2450, %v2446
      %v2651 = vpack.c.b16 %v2451, %v2447
      %v2652 = vpack.c.b16 %v2456, %v2452
      %v2653 = vpack.c.b16 %v2457, %v2453
      %v2654 = vpack.c.b16 %v2458, %v2454
      %v2655 = vpack.c.b16 %v2459, %v2455
      %v2656 = vpack.c.b16 %v2464, %v2460
      %v2657 = vpack.c.b16 %v2465, %v2461
      %v2658 = vpack.c.b16 %v2466, %v2462
      %v2659 = vpack.c.b16 %v2467, %v2463
      %v2660 = vpack.c.b16 %v2472, %v2468
      %v2661 = vpack.c.b16 %v2473, %v2469
      %v2662 = vpack.c.b16 %v2474, %v2470
      %v2663 = vpack.c.b16 %v2475, %v2471
      %v2664 = vpack.c.b16 %v2480, %v2476
      %v2665 = vpack.c.b16 %v2481, %v2477
      %v2666 = vpack.c.b16 %v2482, %v2478
      %v2667 = vpack.c.b16 %v2483, %v2479
      %v2668 = vpack.c.b16 %v2488, %v2484
      %v2669 = vpack.c.b16 %v2489, %v2485
      %v2670 = vpack.c.b16 %v2490, %v2486
      %v2671 = vpack.c.b16 %v2491, %v2487
      %v2672 = vpack.c.b16 %v2496, %v2492
      %v2673 = vpack.c.b16 %v2497, %v2493
      %v2674 = vpack.c.b16 %v2498, %v2494
      %v2675 = vpack.c.b16 %v2499, %v2495
      %v2676 = vpack.c.b16 %v2504, %v2500
      %v2677 = vpack.c.b16 %v2505, %v2501
      %v2678 = vpack.c.b16 %v2506, %v2502
      %v2679 = vpack.c.b16 %v2507, %v2503
      %v2680 = vpack.c.b16 %v2512, %v2508
      %v2681 = vpack.c.b16 %v2513, %v2509
      %v2682 = vpack.c.b16 %v2514, %v2510
      %v2683 = vpack.c.b16 %v2515, %v2511
      %v2684 = vpack.c.b16 %v2520, %v2516
      %v2685 = vpack.c.b16 %v2521, %v2517
      %v2686 = vpack.c.b16 %v2522, %v2518
      %v2687 = vpack.c.b16 %v2523, %v2519
      %v2688 = vpack.c.b16 %v2528, %v2524
      %v2689 = vpack.c.b16 %v2529, %v2525
      %v2690 = vpack.c.b16 %v2530, %v2526
      %v2691 = vpack.c.b16 %v2531, %v2527
      %v2692 = vpack.c.b16 %v2536, %v2532
      %v2693 = vpack.c.b16 %v2537, %v2533
      %v2694 = vpack.c.b16 %v2538, %v2534
      %v2695 = vpack.c.b16 %v2539, %v2535
      %v2696 = vpack.c.b16 %v2544, %v2540
      %v2697 = vpack.c.b16 %v2545, %v2541
      %v2698 = vpack.c.b16 %v2546, %v2542
      %v2699 = vpack.c.b16 %v2547, %v2543
      %v2700 = vpack.c.b16 %v2552, %v2548
      %v2701 = vpack.c.b16 %v2553, %v2549
      %v2702 = vpack.c.b16 %v2554, %v2550
      %v2703 = vpack.c.b16 %v2555, %v2551
      %v2704 = vpack.c.b16 %v2560, %v2556
      %v2705 = vpack.c.b16 %v2561, %v2557
      %v2706 = vpack.c.b16 %v2562, %v2558
      %v2707 = vpack.c.b16 %v2563, %v2559
      %v2708 = vpack.c.b16 %v2568, %v2564
      %v2709 = vpack.c.b16 %v2569, %v2565
      %v2710 = vpack.c.b16 %v2570, %v2566
      %v2711 = vpack.c.b16 %v2571, %v2567
      %v2712 = vpack.c.b16 %v2576, %v2572
      %v2713 = vpack.c.b16 %v2577, %v2573
      %v2714 = vpack.c.b16 %v2578, %v2574
      %v2715 = vpack.c.b16 %v2579, %v2575
      %v2716 = vpack.c.b16 %v2584, %v2580
      %v2717 = vpack.c.b16 %v2585, %v2581
      %v2718 = vpack.c.b16 %v2586, %v2582
      %v2719 = vpack.c.b16 %v2587, %v2583
      %v2720 = vpack.c.b16 %v2592, %v2588
      %v2721 = vpack.c.b16 %v2593, %v2589
      %v2722 = vpack.c.b16 %v2594, %v2590
      %v2723 = vpack.c.b16 %v2595, %v2591
      %2852 = vmatprep.subr.bf16.mxu0 %v2625
      %2853 = vmatpush1.bf16.msra.mxu0 %v2624
      %2854 = vmatprep.subr.bf16.mxu0 %v2621
      %2855 = vmatpush1.bf16.msra.mxu0 %v2620
      %2856 = vmatprep.subr.bf16.mxu0 %v2617
      %2857 = vmatpush1.bf16.msra.mxu0 %v2616
      %2858 = vmatprep.subr.bf16.mxu0 %v2613
      %2859 = vmatpush1.bf16.msra.mxu0 %v2612
      %2860 = vmatprep.subr.bf16.mxu0 %v2609
      %2861 = vmatpush1.bf16.msra.mxu0 %v2608
      %2862 = vmatprep.subr.bf16.mxu0 %v2605
      %2863 = vmatpush1.bf16.msra.mxu0 %v2604
      %2864 = vmatprep.subr.bf16.mxu0 %v2601
      %2865 = vmatpush1.bf16.msra.mxu0 %v2600
      %2866 = vmatprep.subr.bf16.mxu0 %v2597
      %2867 = vmatpush1.bf16.msra.mxu0 %v2596
      %2868 = vmatprep.subr.bf16.mxu0 %v2657
      %2869 = vmatpush2.bf16.msra.mxu0 %v2656
      %2870 = vmatprep.subr.bf16.mxu0 %v2653
      %2871 = vmatpush2.bf16.msra.mxu0 %v2652
      %2872 = vmatprep.subr.bf16.mxu0 %v2649
      %2873 = vmatpush2.bf16.msra.mxu0 %v2648
      %2874 = vmatprep.subr.bf16.mxu0 %v2645
      %2875 = vmatpush2.bf16.msra.mxu0 %v2644
      %2876 = vmatprep.subr.bf16.mxu0 %v2641
      %2877 = vmatpush2.bf16.msra.mxu0 %v2640
      %2878 = vmatprep.subr.bf16.mxu0 %v2637
      %2879 = vmatpush2.bf16.msra.mxu0 %v2636
      %2880 = vmatprep.subr.bf16.mxu0 %v2633
      %2881 = vmatpush2.bf16.msra.mxu0 %v2632
      %2882 = vmatprep.subr.bf16.mxu0 %v2629
      %2883 = vmatpush2.bf16.msra.mxu0 %v2628
      %2884 = vmatprep.mubr.bf16.mxu0 %v2045
      %2885 = vmatmul.mubr.bf16.gmra.mxu0 %v2044
      %v2886 = vpop.f32.mrf.mxu0
      %v2887 = vadd.f32 %v2195, %v2886
      %v2888 = vpop.f32.mrf.mxu0
      %v2889 = vadd.f32 %v2199, %v2888
      %v2890 = vpop.f32.mrf.mxu0
      %v2891 = vpop.f32.mrf.mxu0
      %2892 = vdwg.mxu0
      %2893 = vmatprep.subr.bf16.mxu0 %v2689
      %2894 = vmatpush1.bf16.msra.mxu0 %v2688
      %2895 = vmatprep.subr.bf16.mxu0 %v2685
      %2896 = vmatpush1.bf16.msra.mxu0 %v2684
      %2897 = vmatprep.subr.bf16.mxu0 %v2681
      %2898 = vmatpush1.bf16.msra.mxu0 %v2680
      %2899 = vmatprep.subr.bf16.mxu0 %v2677
      %2900 = vmatpush1.bf16.msra.mxu0 %v2676
      %2901 = vmatprep.subr.bf16.mxu0 %v2673
      %2902 = vmatpush1.bf16.msra.mxu0 %v2672
      %2903 = vmatprep.subr.bf16.mxu0 %v2669
      %2904 = vmatpush1.bf16.msra.mxu0 %v2668
      %2905 = vmatprep.subr.bf16.mxu0 %v2665
      %2906 = vmatpush1.bf16.msra.mxu0 %v2664
      %2907 = vmatprep.subr.bf16.mxu0 %v2661
      %2908 = vmatpush1.bf16.msra.mxu0 %v2660
      %2909 = vmatprep.subr.bf16.mxu0 %v2721
      %2910 = vmatpush2.bf16.msra.mxu0 %v2720
      %2911 = vmatprep.subr.bf16.mxu0 %v2717
      %2912 = vmatpush2.bf16.msra.mxu0 %v2716
      %2913 = vmatprep.subr.bf16.mxu0 %v2713
      %2914 = vmatpush2.bf16.msra.mxu0 %v2712
      %2915 = vmatprep.subr.bf16.mxu0 %v2709
      %2916 = vmatpush2.bf16.msra.mxu0 %v2708
      %2917 = vmatprep.subr.bf16.mxu0 %v2705
      %2918 = vmatpush2.bf16.msra.mxu0 %v2704
      %2919 = vmatprep.subr.bf16.mxu0 %v2701
      %2920 = vmatpush2.bf16.msra.mxu0 %v2700
      %2921 = vmatprep.subr.bf16.mxu0 %v2697
      %2922 = vmatpush2.bf16.msra.mxu0 %v2696
      %2923 = vmatprep.subr.bf16.mxu0 %v2693
      %2924 = vmatpush2.bf16.msra.mxu0 %v2692
      %2925 = vmatprep.mubr.bf16.mxu0 %v2047
      %2926 = vmatmul.mubr.bf16.gmra.mxu0 %v2046
      %v2927 = vpop.f32.mrf.mxu0
      %v2928 = vadd.f32 %v2887, %v2927
      %v2929 = vpop.f32.mrf.mxu0
      %v2930 = vadd.f32 %v2889, %v2929
      %v2931 = vpop.f32.mrf.mxu0
      %v2932 = vpop.f32.mrf.mxu0
      %2933 = vdwg.mxu0
      %2934 = vmatprep.subr.bf16.mxu0 %v2627
      %2935 = vmatpush1.bf16.msra.mxu0 %v2626
      %2936 = vmatprep.subr.bf16.mxu0 %v2623
      %2937 = vmatpush1.bf16.msra.mxu0 %v2622
      %2938 = vmatprep.subr.bf16.mxu0 %v2619
      %2939 = vmatpush1.bf16.msra.mxu0 %v2618
      %2940 = vmatprep.subr.bf16.mxu0 %v2615
      %2941 = vmatpush1.bf16.msra.mxu0 %v2614
      %2942 = vmatprep.subr.bf16.mxu0 %v2611
      %2943 = vmatpush1.bf16.msra.mxu0 %v2610
      %2944 = vmatprep.subr.bf16.mxu0 %v2607
      %2945 = vmatpush1.bf16.msra.mxu0 %v2606
      %2946 = vmatprep.subr.bf16.mxu0 %v2603
      %2947 = vmatpush1.bf16.msra.mxu0 %v2602
      %2948 = vmatprep.subr.bf16.mxu0 %v2599
      %2949 = vmatpush1.bf16.msra.mxu0 %v2598
      %2950 = vmatprep.subr.bf16.mxu0 %v2659
      %2951 = vmatpush2.bf16.msra.mxu0 %v2658
      %2952 = vmatprep.subr.bf16.mxu0 %v2655
      %2953 = vmatpush2.bf16.msra.mxu0 %v2654
      %2954 = vmatprep.subr.bf16.mxu0 %v2651
      %2955 = vmatpush2.bf16.msra.mxu0 %v2650
      %2956 = vmatprep.subr.bf16.mxu0 %v2647
      %2957 = vmatpush2.bf16.msra.mxu0 %v2646
      %2958 = vmatprep.subr.bf16.mxu0 %v2643
      %2959 = vmatpush2.bf16.msra.mxu0 %v2642
      %2960 = vmatprep.subr.bf16.mxu0 %v2639
      %2961 = vmatpush2.bf16.msra.mxu0 %v2638
      %2962 = vmatprep.subr.bf16.mxu0 %v2635
      %2963 = vmatpush2.bf16.msra.mxu0 %v2634
      %2964 = vmatprep.subr.bf16.mxu0 %v2631
      %2965 = vmatpush2.bf16.msra.mxu0 %v2630
      %2966 = vmatprep.mubr.bf16.mxu0 %v2045
      %2967 = vmatmul.mubr.bf16.gmra.mxu0 %v2044
      %v2968 = vpop.f32.mrf.mxu0
      %v2969 = vadd.f32 %v2203, %v2968
      %v2970 = vpop.f32.mrf.mxu0
      %v2971 = vadd.f32 %v2207, %v2970
      %v2972 = vpop.f32.mrf.mxu0
      %v2973 = vpop.f32.mrf.mxu0
      %2974 = vdwg.mxu0
      %2975 = vmatprep.subr.bf16.mxu0 %v2691
      %2976 = vmatpush1.bf16.msra.mxu0 %v2690
      %2977 = vmatprep.subr.bf16.mxu0 %v2687
      %2978 = vmatpush1.bf16.msra.mxu0 %v2686
      %2979 = vmatprep.subr.bf16.mxu0 %v2683
      %2980 = vmatpush1.bf16.msra.mxu0 %v2682
      %2981 = vmatprep.subr.bf16.mxu0 %v2679
      %2982 = vmatpush1.bf16.msra.mxu0 %v2678
      %2983 = vmatprep.subr.bf16.mxu0 %v2675
      %2984 = vmatpush1.bf16.msra.mxu0 %v2674
      %2985 = vmatprep.subr.bf16.mxu0 %v2671
      %2986 = vmatpush1.bf16.msra.mxu0 %v2670
      %2987 = vmatprep.subr.bf16.mxu0 %v2667
      %2988 = vmatpush1.bf16.msra.mxu0 %v2666
      %2989 = vmatprep.subr.bf16.mxu0 %v2663
      %2990 = vmatpush1.bf16.msra.mxu0 %v2662
      %2991 = vmatprep.subr.bf16.mxu0 %v2723
      %2992 = vmatpush2.bf16.msra.mxu0 %v2722
      %2993 = vmatprep.subr.bf16.mxu0 %v2719
      %2994 = vmatpush2.bf16.msra.mxu0 %v2718
      %2995 = vmatprep.subr.bf16.mxu0 %v2715
      %2996 = vmatpush2.bf16.msra.mxu0 %v2714
      %2997 = vmatprep.subr.bf16.mxu0 %v2711
      %2998 = vmatpush2.bf16.msra.mxu0 %v2710
      %2999 = vmatprep.subr.bf16.mxu0 %v2707
      %3000 = vmatpush2.bf16.msra.mxu0 %v2706
      %3001 = vmatprep.subr.bf16.mxu0 %v2703
      %3002 = vmatpush2.bf16.msra.mxu0 %v2702
      %3003 = vmatprep.subr.bf16.mxu0 %v2699
      %3004 = vmatpush2.bf16.msra.mxu0 %v2698
      %3005 = vmatprep.subr.bf16.mxu0 %v2695
      %3006 = vmatpush2.bf16.msra.mxu0 %v2694
      %3007 = vmatprep.mubr.bf16.mxu0 %v2047
      %3008 = vmatmul.mubr.bf16.gmra.mxu0 %v2046
      %v3009 = vpop.f32.mrf.mxu0
      %v3010 = vadd.f32 %v2969, %v3009
      %v3011 = vpop.f32.mrf.mxu0
      %v3012 = vadd.f32 %v2971, %v3011
      %v3013 = vpop.f32.mrf.mxu0
      %v3014 = vpop.f32.mrf.mxu0
      %3015 = vdwg.mxu0
      %v3016 = vmax.f32 %v2928, 0.0
      %v3017 = vmax.f32 %v2930, 0.0
      %v3018 = vmax.f32 %v3010, 0.0
      %v3019 = vmax.f32 %v3012, 0.0
      %v3020 = vpack.c.bf16 %v3016, %v3016
      %v3021 = vpack.c.bf16 %v3017, %v3017
      %v3022 = vpack.c.bf16 %v3018, %v3018
      %v3023 = vpack.c.bf16 %v3019, %v3019
      %v3024 = vld [vmem:[#allocation11] sm:$0xf]
      %v3025 = vld [vmem:[#allocation11 + $0x4] sm:$0xf]
      %v3026 = vld [vmem:[#allocation11 + $0x8] sm:$0xf]
      %v3027 = vld [vmem:[#allocation11 + $0xc] sm:$0xf]
      %v3028 = vld [vmem:[#allocation11 + $0x10] sm:$0xf]
      %v3029 = vld [vmem:[#allocation11 + $0x14] sm:$0xf]
      %v3030 = vld [vmem:[#allocation11 + $0x18] sm:$0xf]
      %v3031 = vld [vmem:[#allocation11 + $0x1c] sm:$0xf]
      %v3032 = vld [vmem:[#allocation11 + $0x20] sm:$0xf]
      %v3033 = vld [vmem:[#allocation11 + $0x24] sm:$0xf]
      %v3034 = vld [vmem:[#allocation11 + $0x28] sm:$0xf]
      %v3035 = vld [vmem:[#allocation11 + $0x2c] sm:$0xf]
      %v3036 = vld [vmem:[#allocation11 + $0x30] sm:$0xf]
      %v3037 = vld [vmem:[#allocation11 + $0x34] sm:$0xf]
      %v3038 = vld [vmem:[#allocation11 + $0x38] sm:$0xf]
      %v3039 = vld [vmem:[#allocation11 + $0x3c] sm:$0xf]
      %v3040 = vld [vmem:[#allocation11 + $0x40] sm:$0xf]
      %v3041 = vld [vmem:[#allocation11 + $0x44] sm:$0xf]
      %v3042 = vld [vmem:[#allocation11 + $0x48] sm:$0xf]
      %v3043 = vld [vmem:[#allocation11 + $0x4c] sm:$0xf]
      %v3044 = vld [vmem:[#allocation11 + $0x50] sm:$0xf]
      %v3045 = vld [vmem:[#allocation11 + $0x54] sm:$0xf]
      %v3046 = vld [vmem:[#allocation11 + $0x58] sm:$0xf]
      %v3047 = vld [vmem:[#allocation11 + $0x5c] sm:$0xf]
      %v3048 = vld [vmem:[#allocation11 + $0x60] sm:$0xf]
      %v3049 = vld [vmem:[#allocation11 + $0x64] sm:$0xf]
      %v3050 = vld [vmem:[#allocation11 + $0x68] sm:$0xf]
      %v3051 = vld [vmem:[#allocation11 + $0x6c] sm:$0xf]
      %v3052 = vld [vmem:[#allocation11 + $0x70] sm:$0xf]
      %v3053 = vld [vmem:[#allocation11 + $0x74] sm:$0xf]
      %v3054 = vld [vmem:[#allocation11 + $0x78] sm:$0xf]
      %v3055 = vld [vmem:[#allocation11 + $0x7c] sm:$0xf]
      %v3056 = vld [vmem:[#allocation11 + $0x80] sm:$0xf]
      %v3057 = vld [vmem:[#allocation11 + $0x84] sm:$0xf]
      %v3058 = vld [vmem:[#allocation11 + $0x88] sm:$0xf]
      %v3059 = vld [vmem:[#allocation11 + $0x8c] sm:$0xf]
      %v3060 = vld [vmem:[#allocation11 + $0x90] sm:$0xf]
      %v3061 = vld [vmem:[#allocation11 + $0x94] sm:$0xf]
      %v3062 = vld [vmem:[#allocation11 + $0x98] sm:$0xf]
      %v3063 = vld [vmem:[#allocation11 + $0x9c] sm:$0xf]
      %v3064 = vld [vmem:[#allocation11 + $0xa0] sm:$0xf]
      %v3065 = vld [vmem:[#allocation11 + $0xa4] sm:$0xf]
      %v3066 = vld [vmem:[#allocation11 + $0xa8] sm:$0xf]
      %v3067 = vld [vmem:[#allocation11 + $0xac] sm:$0xf]
      %v3068 = vld [vmem:[#allocation11 + $0xb0] sm:$0xf]
      %v3069 = vld [vmem:[#allocation11 + $0xb4] sm:$0xf]
      %v3070 = vld [vmem:[#allocation11 + $0xb8] sm:$0xf]
      %v3071 = vld [vmem:[#allocation11 + $0xbc] sm:$0xf]
      %v3072 = vld [vmem:[#allocation11 + $0xc0] sm:$0xf]
      %v3073 = vld [vmem:[#allocation11 + $0xc4] sm:$0xf]
      %v3074 = vld [vmem:[#allocation11 + $0xc8] sm:$0xf]
      %v3075 = vld [vmem:[#allocation11 + $0xcc] sm:$0xf]
      %v3076 = vld [vmem:[#allocation11 + $0xd0] sm:$0xf]
      %v3077 = vld [vmem:[#allocation11 + $0xd4] sm:$0xf]
      %v3078 = vld [vmem:[#allocation11 + $0xd8] sm:$0xf]
      %v3079 = vld [vmem:[#allocation11 + $0xdc] sm:$0xf]
      %v3080 = vld [vmem:[#allocation11 + $0xe0] sm:$0xf]
      %v3081 = vld [vmem:[#allocation11 + $0xe4] sm:$0xf]
      %v3082 = vld [vmem:[#allocation11 + $0xe8] sm:$0xf]
      %v3083 = vld [vmem:[#allocation11 + $0xec] sm:$0xf]
      %v3084 = vld [vmem:[#allocation11 + $0xf0] sm:$0xf]
      %v3085 = vld [vmem:[#allocation11 + $0xf4] sm:$0xf]
      %v3086 = vld [vmem:[#allocation11 + $0xf8] sm:$0xf]
      %v3087 = vld [vmem:[#allocation11 + $0xfc] sm:$0xf]
      %v3088 = vld [vmem:[%s6] sm:$0x1]
      %v3090 = vlaneseq
      %v3091 = vshrl.u32 %v3090, 7
      %v3092 = vsub.s32 0, %v3091
      %v3093 = vrot.slane %v3088, %v3092
      %v3159 = vunpack.c.l.b16 %v3024
      %v3160 = vunpack.c.l.b16 %v3025
      %v3161 = vunpack.c.l.b16 %v3026
      %v3162 = vunpack.c.l.b16 %v3027
      %v3163 = vunpack.c.l.b16 %v3028
      %v3164 = vunpack.c.l.b16 %v3029
      %v3165 = vunpack.c.l.b16 %v3030
      %v3166 = vunpack.c.l.b16 %v3031
      %v3167 = vunpack.c.l.b16 %v3032
      %v3168 = vunpack.c.l.b16 %v3033
      %v3169 = vunpack.c.l.b16 %v3034
      %v3170 = vunpack.c.l.b16 %v3035
      %v3171 = vunpack.c.l.b16 %v3036
      %v3172 = vunpack.c.l.b16 %v3037
      %v3173 = vunpack.c.l.b16 %v3038
      %v3174 = vunpack.c.l.b16 %v3039
      %v3175 = vunpack.c.l.b16 %v3040
      %v3176 = vunpack.c.l.b16 %v3041
      %v3177 = vunpack.c.l.b16 %v3042
      %v3178 = vunpack.c.l.b16 %v3043
      %v3179 = vunpack.c.l.b16 %v3044
      %v3180 = vunpack.c.l.b16 %v3045
      %v3181 = vunpack.c.l.b16 %v3046
      %v3182 = vunpack.c.l.b16 %v3047
      %v3183 = vunpack.c.l.b16 %v3048
      %v3184 = vunpack.c.l.b16 %v3049
      %v3185 = vunpack.c.l.b16 %v3050
      %v3186 = vunpack.c.l.b16 %v3051
      %v3187 = vunpack.c.l.b16 %v3052
      %v3188 = vunpack.c.l.b16 %v3053
      %v3189 = vunpack.c.l.b16 %v3054
      %v3190 = vunpack.c.l.b16 %v3055
      %v3191 = vunpack.c.l.b16 %v3056
      %v3192 = vunpack.c.l.b16 %v3057
      %v3193 = vunpack.c.l.b16 %v3058
      %v3194 = vunpack.c.l.b16 %v3059
      %v3195 = vunpack.c.l.b16 %v3060
      %v3196 = vunpack.c.l.b16 %v3061
      %v3197 = vunpack.c.l.b16 %v3062
      %v3198 = vunpack.c.l.b16 %v3063
      %v3199 = vunpack.c.l.b16 %v3064
      %v3200 = vunpack.c.l.b16 %v3065
      %v3201 = vunpack.c.l.b16 %v3066
      %v3202 = vunpack.c.l.b16 %v3067
      %v3203 = vunpack.c.l.b16 %v3068
      %v3204 = vunpack.c.l.b16 %v3069
      %v3205 = vunpack.c.l.b16 %v3070
      %v3206 = vunpack.c.l.b16 %v3071
      %v3207 = vunpack.c.l.b16 %v3072
      %v3208 = vunpack.c.l.b16 %v3073
      %v3209 = vunpack.c.l.b16 %v3074
      %v3210 = vunpack.c.l.b16 %v3075
      %v3211 = vunpack.c.l.b16 %v3076
      %v3212 = vunpack.c.l.b16 %v3077
      %v3213 = vunpack.c.l.b16 %v3078
      %v3214 = vunpack.c.l.b16 %v3079
      %v3215 = vunpack.c.l.b16 %v3080
      %v3216 = vunpack.c.l.b16 %v3081
      %v3217 = vunpack.c.l.b16 %v3082
      %v3218 = vunpack.c.l.b16 %v3083
      %v3219 = vunpack.c.l.b16 %v3084
      %v3220 = vunpack.c.l.b16 %v3085
      %v3221 = vunpack.c.l.b16 %v3086
      %v3222 = vunpack.c.l.b16 %v3087
      %v3223 = vpack.c.b16 %v3160, %v3159
      %v3224 = vpack.c.b16 %v3162, %v3161
      %v3225 = vpack.c.b16 %v3164, %v3163
      %v3226 = vpack.c.b16 %v3166, %v3165
      %v3227 = vpack.c.b16 %v3168, %v3167
      %v3228 = vpack.c.b16 %v3170, %v3169
      %v3229 = vpack.c.b16 %v3172, %v3171
      %v3230 = vpack.c.b16 %v3174, %v3173
      %v3231 = vpack.c.b16 %v3176, %v3175
      %v3232 = vpack.c.b16 %v3178, %v3177
      %v3233 = vpack.c.b16 %v3180, %v3179
      %v3234 = vpack.c.b16 %v3182, %v3181
      %v3235 = vpack.c.b16 %v3184, %v3183
      %v3236 = vpack.c.b16 %v3186, %v3185
      %v3237 = vpack.c.b16 %v3188, %v3187
      %v3238 = vpack.c.b16 %v3190, %v3189
      %v3239 = vpack.c.b16 %v3192, %v3191
      %v3240 = vpack.c.b16 %v3194, %v3193
      %v3241 = vpack.c.b16 %v3196, %v3195
      %v3242 = vpack.c.b16 %v3198, %v3197
      %v3243 = vpack.c.b16 %v3200, %v3199
      %v3244 = vpack.c.b16 %v3202, %v3201
      %v3245 = vpack.c.b16 %v3204, %v3203
      %v3246 = vpack.c.b16 %v3206, %v3205
      %v3247 = vpack.c.b16 %v3208, %v3207
      %v3248 = vpack.c.b16 %v3210, %v3209
      %v3249 = vpack.c.b16 %v3212, %v3211
      %v3250 = vpack.c.b16 %v3214, %v3213
      %v3251 = vpack.c.b16 %v3216, %v3215
      %v3252 = vpack.c.b16 %v3218, %v3217
      %v3253 = vpack.c.b16 %v3220, %v3219
      %v3254 = vpack.c.b16 %v3222, %v3221
      %3287 = vmatprep.subr.bf16.mxu0 0
      %3288 = vmatpush1.bf16.msra.mxu0 %v3230
      %3289 = vmatprep.subr.bf16.mxu0 0
      %3290 = vmatpush1.bf16.msra.mxu0 %v3229
      %3291 = vmatprep.subr.bf16.mxu0 0
      %3292 = vmatpush1.bf16.msra.mxu0 %v3228
      %3293 = vmatprep.subr.bf16.mxu0 0
      %3294 = vmatpush1.bf16.msra.mxu0 %v3227
      %3295 = vmatprep.subr.bf16.mxu0 0
      %3296 = vmatpush1.bf16.msra.mxu0 %v3226
      %3297 = vmatprep.subr.bf16.mxu0 0
      %3298 = vmatpush1.bf16.msra.mxu0 %v3225
      %3299 = vmatprep.subr.bf16.mxu0 0
      %3300 = vmatpush1.bf16.msra.mxu0 %v3224
      %3301 = vmatprep.subr.bf16.mxu0 0
      %3302 = vmatpush1.bf16.msra.mxu0 %v3223
      %3303 = vmatprep.subr.bf16.mxu0 0
      %3304 = vmatpush2.bf16.msra.mxu0 %v3238
      %3305 = vmatprep.subr.bf16.mxu0 0
      %3306 = vmatpush2.bf16.msra.mxu0 %v3237
      %3307 = vmatprep.subr.bf16.mxu0 0
      %3308 = vmatpush2.bf16.msra.mxu0 %v3236
      %3309 = vmatprep.subr.bf16.mxu0 0
      %3310 = vmatpush2.bf16.msra.mxu0 %v3235
      %3311 = vmatprep.subr.bf16.mxu0 0
      %3312 = vmatpush2.bf16.msra.mxu0 %v3234
      %3313 = vmatprep.subr.bf16.mxu0 0
      %3314 = vmatpush2.bf16.msra.mxu0 %v3233
      %3315 = vmatprep.subr.bf16.mxu0 0
      %3316 = vmatpush2.bf16.msra.mxu0 %v3232
      %3317 = vmatprep.subr.bf16.mxu0 0
      %3318 = vmatpush2.bf16.msra.mxu0 %v3231
      %3319 = vmatprep.mubr.bf16.mxu0 %v3021
      %3320 = vmatmul.mubr.bf16.gmra.mxu0 %v3020
      %v3321 = vpop.f32.mrf.mxu0
      %v3322 = vadd.f32 %v3093, %v3321
      %v3323 = vpop.f32.mrf.mxu0
      %v3324 = vpop.f32.mrf.mxu0
      %v3325 = vpop.f32.mrf.mxu0
      %3326 = vdwg.mxu0
      %3327 = vmatprep.subr.bf16.mxu0 0
      %3328 = vmatpush1.bf16.msra.mxu0 %v3246
      %3329 = vmatprep.subr.bf16.mxu0 0
      %3330 = vmatpush1.bf16.msra.mxu0 %v3245
      %3331 = vmatprep.subr.bf16.mxu0 0
      %3332 = vmatpush1.bf16.msra.mxu0 %v3244
      %3333 = vmatprep.subr.bf16.mxu0 0
      %3334 = vmatpush1.bf16.msra.mxu0 %v3243
      %3335 = vmatprep.subr.bf16.mxu0 0
      %3336 = vmatpush1.bf16.msra.mxu0 %v3242
      %3337 = vmatprep.subr.bf16.mxu0 0
      %3338 = vmatpush1.bf16.msra.mxu0 %v3241
      %3339 = vmatprep.subr.bf16.mxu0 0
      %3340 = vmatpush1.bf16.msra.mxu0 %v3240
      %3341 = vmatprep.subr.bf16.mxu0 0
      %3342 = vmatpush1.bf16.msra.mxu0 %v3239
      %3343 = vmatprep.subr.bf16.mxu0 0
      %3344 = vmatpush2.bf16.msra.mxu0 %v3254
      %3345 = vmatprep.subr.bf16.mxu0 0
      %3346 = vmatpush2.bf16.msra.mxu0 %v3253
      %3347 = vmatprep.subr.bf16.mxu0 0
      %3348 = vmatpush2.bf16.msra.mxu0 %v3252
      %3349 = vmatprep.subr.bf16.mxu0 0
      %3350 = vmatpush2.bf16.msra.mxu0 %v3251
      %3351 = vmatprep.subr.bf16.mxu0 0
      %3352 = vmatpush2.bf16.msra.mxu0 %v3250
      %3353 = vmatprep.subr.bf16.mxu0 0
      %3354 = vmatpush2.bf16.msra.mxu0 %v3249
      %3355 = vmatprep.subr.bf16.mxu0 0
      %3356 = vmatpush2.bf16.msra.mxu0 %v3248
      %3357 = vmatprep.subr.bf16.mxu0 0
      %3358 = vmatpush2.bf16.msra.mxu0 %v3247
      %3359 = vmatprep.mubr.bf16.mxu0 %v3023
      %3360 = vmatmul.mubr.bf16.gmra.mxu0 %v3022
      %v3361 = vpop.f32.mrf.mxu0
      %v3362 = vadd.f32 %v3322, %v3361
      %v3363 = vpop.f32.mrf.mxu0
      %v3364 = vpop.f32.mrf.mxu0
      %v3365 = vpop.f32.mrf.mxu0
      %3366 = vdwg.mxu0
      %3367 = vst [vmem:[#allocation12] sm:$0xff] %v3362
    $region57: #{tpu_custom_call.1} parent=1 // pred_fallthru
      _
    // Predicated region
    $region58: #{tpu_custom_call.1} parent=1 // pred_check
      _
    $region59: #{tpu_custom_call.1} parent=1 // pred_check_branch
      %3369 = sbr.rel (0) target = $region61
    $region60: #{tpu_custom_call.1} parent=1 // pred_region
      %s3371 = ssub.s32 128, 128
      %3372 = vsyncadd [#allocation5], %s3371
      %s3374 = sshll.u32 [#allocation12], 4
      %s3375 = int_to_ptr.vmem [resolvable:$true] %s3374
      %3377 = dma.vmem_to_hbm [thread:$0]  %s3375, 128, %s7, [#allocation5]
    $region61: #{tpu_custom_call.1} parent=1 // pred_fallthru
      _
    // Predicated region
    $region62: #{tpu_custom_call.1} parent=1 // pred_check
      _
    $region63: #{tpu_custom_call.1} parent=1 // pred_check_branch
      %3379 = sbr.rel (0) target = $region65
    $region64: #{tpu_custom_call.1} parent=1 // pred_region
      %s3381 = ssub.s32 256, 256
      %3382 = vsyncadd [#allocation14], %s3381
      %s3384 = sshll.u32 [#allocation13], 4
      %s3385 = int_to_ptr.vmem [resolvable:$true] %s3384
      %3387 = dma.vmem_to_hbm [thread:$0]  %s3385, 256, %s8, [#allocation14]
    $region65: #{tpu_custom_call.1} parent=1 // pred_fallthru
      _
    // Predicated region
    $region66: #{tpu_custom_call.1} parent=1 // pred_check
      _
    $region67: #{tpu_custom_call.1} parent=1 // pred_check_branch
      %3389 = sbr.rel (0) target = $region69
    $region68: #{tpu_custom_call.1} parent=1 // pred_region
      %3390 = dma.done [#allocation5], 128
    $region69: #{tpu_custom_call.1} parent=1 // pred_fallthru
      _
    // Predicated region
    $region70: #{tpu_custom_call.1} parent=1 // pred_check
      _
    $region71: #{tpu_custom_call.1} parent=1 // pred_check_branch
      %3392 = sbr.rel (0) target = $region73
    $region72: #{tpu_custom_call.1} parent=1 // pred_region
      %3393 = dma.done [#allocation14], 256
    $region73: #{tpu_custom_call.1} parent=1 // pred_fallthru
      _
    %3394 = vsyncpa [#allocation4], 1
    %3395 = vsyncpa [#allocation7], 1
    %3396 = vsyncpa [#allocation10], 1
    %3397 = vsyncpa [#allocation5], 1
    %3398 = vsyncpa [#allocation14], 1

</llo_original>
